<compile_context>
chip_gen: v5e
topology: v5e:2x2
jax: 0.10.0
libtpu: 0.0.40
codegen_flags: <defaults>
</compile_context>

<pallas_src>
import functools

import jax
import jax.numpy as jnp
import numpy as np
from jax.experimental import pallas as pl
from jax.experimental.pallas import tpu as pltpu

# ---------------- model hyper-parameters (from the PyTorch script) ----------------
N_LAYERS = 2
N_HIDDEN = 16
OUT_SIZE = 1
# example / small shapes
BATCH = 2
SEQ = 8
IN_SIZE = 8


# =============================== Pallas kernel ===============================
def bilstm_kernel(xx_ref, h0_ref, c0_ref, w0k_ref, w1k_ref, whh0_ref, whh1_ref,
                  b0_ref, b1_ref, wfc_ref, bfc_ref, out_ref, st_ref, *, Bp, T, H):
    # Fused gate-column layout (8H = 128 lanes): [ i_f i_b | f_f f_b | o_f o_b | g_f g_b ].
    # Carried state layout per layer: h = [h_fwd | h_bwd]  (Bp, 2H); c likewise.
    lane8 = jax.lax.broadcasted_iota(jnp.int32, (Bp, 8 * H), 1)   # hoisted (not re-built per step)

    def fused_steps(pre, h, c, whh):
        """T fused (fwd+bwd) recurrent steps.  pre: (T*Bp, 8H) hoisted input contribution whose
        row-block s holds [fwd gates from time s | bwd gates from time T-1-s] + bias."""
        hs = [None] * T
        for s in range(T):
            gates = pre[s * Bp:(s + 1) * Bp, :] + jnp.dot(
                h, whh, preferred_element_type=jnp.float32)                       # (Bp, 8H)
            act = jnp.where(lane8 < 6 * H, jax.nn.sigmoid(gates), jnp.tanh(gates))
            i = act[:, 0:2 * H]
            f = act[:, 2 * H:4 * H]
            o = act[:, 4 * H:6 * H]
            g = act[:, 6 * H:8 * H]
            c = f * c + i * g
            h = o * jnp.tanh(c)
            hs[s] = h
        return h, c, hs

    # ---------------- layer 0: single K-fused hoisted input projection -----------------------
    pre0 = jnp.dot(xx_ref[...], w0k_ref[...], preferred_element_type=jnp.float32) + b0_ref[...]
    h_l0, c_l0, hs0 = fused_steps(pre0, h0_ref[0], c0_ref[0], whh0_ref[...])

    # ---------------- layer 1: LHS row-block s = [h_step[s] | h_step[T-1-s]] -----------------
    # TODO(synk): nn.LSTM inter-layer dropout (p=0.2) is training-only; eval-mode forward implemented.
    lhs1 = jnp.concatenate(
        [jnp.concatenate([hs0[s], hs0[T - 1 - s]], axis=1) for s in range(T)], axis=0)  # (T*Bp, 4H)
    pre1 = jnp.dot(lhs1, w1k_ref[...], preferred_element_type=jnp.float32) + b1_ref[...]
    h_l1, c_l1, hs1 = fused_steps(pre1, h0_ref[1], c0_ref[1], whh1_ref[...])

    # ---------------- fc head on out[:, -1] = [hf1[T-1] | hb1[T-1]] ---------------------------
    lane2 = jax.lax.broadcasted_iota(jnp.int32, (Bp, 2 * H), 1)
    feat = jnp.where(lane2 < H, hs1[T - 1], hs1[0])                                   # (Bp, 2H)
    out_ref[...] = jnp.sum(feat * wfc_ref[...], axis=-1, keepdims=True) + bfc_ref[...]

    # ---------------- final states: one lane-dense (Bp, 8H) = (8, 128) unmasked store ---------
    st_ref[...] = jnp.concatenate([h_l0, h_l1, c_l0, c_l1], axis=1)


# =============================== wrapper ===============================
@jax.jit
def bilstm_forward(x, h0, c0, w0k, w1k, whh0, whh1, b0, b1, wfc_t, bfc):
    B, T, Din = x.shape
    H = h0.shape[2]
    Bp = 8                                         # pad batch to the 8-sublane granule

    # ---- wrapper-side layout plumbing (free XLA ops) ----
    x_p = jnp.pad(x, ((0, Bp - B), (0, 0), (0, 0)))                                  # (Bp, T, Din)
    x_tm = jnp.transpose(x_p, (1, 0, 2))                                             # (T, Bp, Din)
    xx = jnp.concatenate([x_tm, x_tm[::-1]], axis=-1).reshape(T * Bp, 2 * Din)       # [x_t | x_{T-1-t}]
    h0_p = jnp.pad(h0, ((0, 0), (0, Bp - B), (0, 0)))                                # (4, Bp, H)
    c0_p = jnp.pad(c0, ((0, 0), (0, Bp - B), (0, 0)))
    h0k = jnp.concatenate([h0_p[0::2], h0_p[1::2]], axis=-1)                         # (2, Bp, 2H)
    c0k = jnp.concatenate([c0_p[0::2], c0_p[1::2]], axis=-1)

    # advisory cost estimate for the XLA scheduler
    flops = (2 * T * Bp * (2 * Din) * (8 * H)                      # layer-0 hoisted projection
             + 2 * T * Bp * (4 * H) * (8 * H)                      # layer-1 hoisted projection
             + N_LAYERS * T * 2 * Bp * (2 * H) * (8 * H))          # recurrent h @ W_hh
    transcendentals = N_LAYERS * T * (2 * Bp * 8 * H + Bp * 2 * H)
    bytes_accessed = 4 * (xx.size + h0k.size + c0k.size + w0k.size + w1k.size + whh0.size
                          + whh1.size + b0.size + b1.size + wfc_t.size + bfc.size
                          + Bp * OUT_SIZE + Bp * 8 * H)

    vmem = lambda: pl.BlockSpec(memory_space=pltpu.MemorySpace.VMEM)
    kernel = functools.partial(bilstm_kernel, Bp=Bp, T=T, H=H)
    out_p, slab = pl.pallas_call(
        kernel,
        out_shape=(jax.ShapeDtypeStruct((Bp, OUT_SIZE), jnp.float32),   # fc output (padded batch)
                   jax.ShapeDtypeStruct((Bp, 8 * H), jnp.float32)),     # [h_l0|h_l1|c_l0|c_l1] slab
        in_specs=[vmem() for _ in range(11)],
        out_specs=(vmem(), vmem()),
        cost_estimate=pl.CostEstimate(flops=flops, transcendentals=transcendentals,
                                      bytes_accessed=bytes_accessed),
    )(xx, h0k, c0k, w0k, w1k, whh0, whh1, b0, b1, wfc_t, bfc)

    # drop pad rows + unpack the lane-dense state slab into PyTorch layout
    out = out_p[:B]
    hn = jnp.transpose(slab[:B, 0:4 * H].reshape(B, 2 * N_LAYERS, H), (1, 0, 2))
    cn = jnp.transpose(slab[:B, 4 * H:8 * H].reshape(B, 2 * N_LAYERS, H), (1, 0, 2))
    return out, hn, cn


# ---------------- host-side weight repacking into the fused kernel layout ----------------
def pack_params(wih0, wih1, whh, b, wfc, H):
    """PyTorch-layout per-direction weights ([i,f,g,o] gate columns, transposed (Din, 4H))
    -> fused layout [ i_f i_b | f_f f_b | o_f o_b | g_f g_b ] with K-fused input projections."""
    def gate_blocks(w):
        return w[..., 0:H], w[..., H:2 * H], w[..., 2 * H:3 * H], w[..., 3 * H:4 * H]  # i, f, g, o

    def to_fwd_cols(w):               # (K, 4H) -> (K, 8H), forward gate columns filled
        i, f, g, o = gate_blocks(w)
        z = jnp.zeros_like(i)
        return jnp.concatenate([i, z, f, z, o, z, g, z], axis=-1)

    def to_bwd_cols(w):               # (K, 4H) -> (K, 8H), backward gate columns filled
        i, f, g, o = gate_blocks(w)
        z = jnp.zeros_like(i)
        return jnp.concatenate([z, i, z, f, z, o, z, g], axis=-1)

    def pack_bias(bf, bb):
        i_f, f_f, g_f, o_f = gate_blocks(bf)
        i_b, f_b, g_b, o_b = gate_blocks(bb)
        return jnp.concatenate([i_f, i_b, f_f, f_b, o_f, o_b, g_f, g_b], axis=-1)     # (1, 8H)

    # layer 0: K-fused over [x_t | x_{T-1-t}]
    w0k = jnp.concatenate([to_fwd_cols(wih0[0]), to_bwd_cols(wih0[1])], axis=0)       # (2*Din, 8H)

    # layer 1: K-fused over [h_step[s] | h_step[T-1-s]]  (absorbs the backward time reversal)
    w1f = to_fwd_cols(wih1[0])                                                        # (2H, 8H)
    w1b = to_bwd_cols(wih1[1])                                                        # (2H, 8H)
    wA = jnp.concatenate([w1f[:H], w1b[H:2 * H]], axis=0)                             # (2H, 8H)
    wB = jnp.concatenate([w1b[:H], w1f[H:2 * H]], axis=0)                             # (2H, 8H)
    w1k = jnp.concatenate([wA, wB], axis=0)                                           # (4H, 8H)

    # recurrent weights: block-diagonal over directions, acting on h = [h_fwd | h_bwd]
    whh0 = jnp.concatenate([to_fwd_cols(whh[0]), to_bwd_cols(whh[1])], axis=0)        # (2H, 8H)
    whh1 = jnp.concatenate([to_fwd_cols(whh[2]), to_bwd_cols(whh[3])], axis=0)        # (2H, 8H)

    b0 = pack_bias(b[0], b[1])
    b1 = pack_bias(b[2], b[3])
    wfc_t = wfc.T                                                                     # (OUT_SIZE, 2H)
    return w0k, w1k, whh0, whh1, b0, b1, wfc_t


# ---------------- pure-JAX reference (PyTorch semantics, untouched layout) ----------------
def _lstm_cell_ref(x_t, h, c, wih, whh, bias, H):
    gates = (jnp.dot(x_t, wih, preferred_element_type=jnp.float32)
             + jnp.dot(h, whh, preferred_element_type=jnp.float32) + bias)
    i = jax.nn.sigmoid(gates[:, 0 * H:1 * H])
    f = jax.nn.sigmoid(gates[:, 1 * H:2 * H])
    g = jnp.tanh(gates[:, 2 * H:3 * H])
    o = jax.nn.sigmoid(gates[:, 3 * H:4 * H])
    c_new = f * c + i * g
    h_new = o * jnp.tanh(c_new)
    return h_new, c_new


def bilstm_ref(x, h0, c0, wih0, wih1, whh, b, wfc, bfc):
    B, T, _ = x.shape
    H = h0.shape[2]

    def run_dir(inputs, idx, wih, reverse):
        h, c = h0[idx], c0[idx]
        outs = [None] * T
        ts = range(T - 1, -1, -1) if reverse else range(T)
        for t in ts:
            h, c = _lstm_cell_ref(inputs[:, t, :], h, c, wih, whh[idx], b[idx], H)
            outs[t] = h
        return jnp.stack(outs, axis=1), h, c

    f0, hf0, cf0 = run_dir(x, 0, wih0[0], False)
    b0, hb0, cb0 = run_dir(x, 1, wih0[1], True)
    l0 = jnp.concatenate([f0, b0], axis=-1)
    f1, hf1, cf1 = run_dir(l0, 2, wih1[0], False)
    b1, hb1, cb1 = run_dir(l0, 3, wih1[1], True)
    l1 = jnp.concatenate([f1, b1], axis=-1)
    out = jnp.dot(l1[:, -1], wfc) + bfc
    hn = jnp.stack([hf0, hb0, hf1, hb1], axis=0)
    cn = jnp.stack([cf0, cb0, cf1, cb1], axis=0)
    return out, hn, cn


if __name__ == "__main__":
    H = N_HIDDEN
    key = jax.random.PRNGKey(0)
    keys = jax.random.split(key, 16)
    k = 1.0 / np.sqrt(H)

    # PyTorch-style parameters (uniform(-1/sqrt(H), 1/sqrt(H)) init), gate order [i, f, g, o]
    wih0 = jax.random.uniform(keys[0], (2, IN_SIZE, 4 * H), jnp.float32, -k, k)   # layer 0, dirs 0/1
    wih1 = jax.random.uniform(keys[1], (2, 2 * H, 4 * H), jnp.float32, -k, k)     # layer 1, dirs 0/1
    whh = jax.random.uniform(keys[2], (4, H, 4 * H), jnp.float32, -k, k)          # index = layer*2+dir
    b_ih = jax.random.uniform(keys[3], (4, 1, 4 * H), jnp.float32, -k, k)
    b_hh = jax.random.uniform(keys[4], (4, 1, 4 * H), jnp.float32, -k, k)
    b = b_ih + b_hh                                                               # combined bias
    kfc = 1.0 / np.sqrt(2 * H)
    wfc = jax.random.uniform(keys[5], (2 * H, OUT_SIZE), jnp.float32, -kfc, kfc)
    bfc = jax.random.uniform(keys[6], (1, OUT_SIZE), jnp.float32, -kfc, kfc)

    # inputs: x and init_hidden (zeros), like the PyTorch module
    x = jax.random.normal(keys[7], (BATCH, SEQ, IN_SIZE), jnp.float32)
    h0 = jnp.zeros((2 * N_LAYERS, BATCH, H), jnp.float32)
    c0 = jnp.zeros((2 * N_LAYERS, BATCH, H), jnp.float32)

    packed = pack_params(wih0, wih1, whh, b, wfc, H)
    out, hn, cn = bilstm_forward(x, h0, c0, *packed, bfc)
    jax.block_until_ready((out, hn, cn))

    out_r, hn_r, cn_r = bilstm_ref(x, h0, c0, wih0, wih1, whh, b, wfc, bfc)
    np.testing.assert_allclose(np.asarray(out), np.asarray(out_r), rtol=1e-5, atol=1e-5)
    np.testing.assert_allclose(np.asarray(hn), np.asarray(hn_r), rtol=1e-5, atol=1e-5)
    np.testing.assert_allclose(np.asarray(cn), np.asarray(cn_r), rtol=1e-5, atol=1e-5)

    print("KERNEL_OK")
</pallas_src>

<mosaic_0001>
module attributes {stable_mosaic.version = 11 : i64} {
  func.func @bilstm_kernel(%arg0: memref<64x16xf32, #tpu.memory_space<vmem>>, %arg1: memref<2x8x32xf32, #tpu.memory_space<vmem>>, %arg2: memref<2x8x32xf32, #tpu.memory_space<vmem>>, %arg3: memref<16x128xf32, #tpu.memory_space<vmem>>, %arg4: memref<64x128xf32, #tpu.memory_space<vmem>>, %arg5: memref<32x128xf32, #tpu.memory_space<vmem>>, %arg6: memref<32x128xf32, #tpu.memory_space<vmem>>, %arg7: memref<1x128xf32, #tpu.memory_space<vmem>>, %arg8: memref<1x128xf32, #tpu.memory_space<vmem>>, %arg9: memref<1x32xf32, #tpu.memory_space<vmem>>, %arg10: memref<1x1xf32, #tpu.memory_space<vmem>>, %arg11: memref<8x1xf32, #tpu.memory_space<vmem>>, %arg12: memref<8x128xf32, #tpu.memory_space<vmem>>) attributes {dimension_semantics = [], scalar_prefetch = 0 : i64, scratch_operands = 0 : i64, tpu.core_type = #tpu.core_type<tc>} {
    %0 = tpu.iota {dimensions = array<i32: 1>} : vector<8x128xi32>
    %c0 = arith.constant 0 : index
    %c0_0 = arith.constant 0 : index
    %1 = vector.load %arg0[%c0, %c0_0] : memref<64x16xf32, #tpu.memory_space<vmem>>, vector<64x16xf32>
    %c0_1 = arith.constant 0 : index
    %c0_2 = arith.constant 0 : index
    %2 = vector.load %arg3[%c0_1, %c0_2] : memref<16x128xf32, #tpu.memory_space<vmem>>, vector<16x128xf32>
    %cst = arith.constant dense<0.000000e+00> : vector<64x128xf32>
    %3 = tpu.matmul %1, %2, %cst {dimension_numbers = #tpu.dot_dimension_numbers<[1], [0], [0], [1], [0, 0, 1, 1], [], []>} : vector<64x16xf32>, vector<16x128xf32>, vector<64x128xf32> -> vector<64x128xf32>
    %c0_3 = arith.constant 0 : index
    %c0_4 = arith.constant 0 : index
    %4 = vector.load %arg7[%c0_3, %c0_4] : memref<1x128xf32, #tpu.memory_space<vmem>>, vector<1x128xf32>
    %5 = vector.broadcast %4 : vector<1x128xf32> to vector<64x128xf32>
    %6 = arith.addf %3, %5 : vector<64x128xf32>
    %c0_5 = arith.constant 0 : index
    %c0_6 = arith.constant 0 : index
    %c0_7 = arith.constant 0 : index
    %7 = vector.load %arg1[%c0_5, %c0_6, %c0_7] : memref<2x8x32xf32, #tpu.memory_space<vmem>>, vector<1x8x32xf32>
    %8 = vector.shape_cast %7 : vector<1x8x32xf32> to vector<8x32xf32>
    %c0_8 = arith.constant 0 : index
    %c0_9 = arith.constant 0 : index
    %c0_10 = arith.constant 0 : index
    %9 = vector.load %arg2[%c0_8, %c0_9, %c0_10] : memref<2x8x32xf32, #tpu.memory_space<vmem>>, vector<1x8x32xf32>
    %10 = vector.shape_cast %9 : vector<1x8x32xf32> to vector<8x32xf32>
    %c0_11 = arith.constant 0 : index
    %c0_12 = arith.constant 0 : index
    %11 = vector.load %arg5[%c0_11, %c0_12] : memref<32x128xf32, #tpu.memory_space<vmem>>, vector<32x128xf32>
    %12 = vector.extract_strided_slice %6 {offsets = [0, 0], sizes = [8, 128], strides = [1, 1]} : vector<64x128xf32> to vector<8x128xf32>
    %cst_13 = arith.constant dense<0.000000e+00> : vector<8x128xf32>
    %13 = tpu.matmul %8, %11, %cst_13 {dimension_numbers = #tpu.dot_dimension_numbers<[1], [0], [0], [1], [0, 0, 1, 1], [], []>} : vector<8x32xf32>, vector<32x128xf32>, vector<8x128xf32> -> vector<8x128xf32>
    %14 = arith.addf %12, %13 : vector<8x128xf32>
    %c96_i32 = arith.constant 96 : i32
    %15 = vector.broadcast %c96_i32 : i32 to vector<8x128xi32>
    %16 = arith.cmpi slt, %0, %15 : vector<8x128xi32>
    %17 = arith.negf %14 : vector<8x128xf32>
    %18 = math.exp %17 : vector<8x128xf32>
    %cst_14 = arith.constant 1.000000e+00 : f32
    %19 = vector.broadcast %cst_14 : f32 to vector<8x128xf32>
    %20 = arith.addf %19, %18 : vector<8x128xf32>
    %21 = arith.divf %19, %20 : vector<8x128xf32>
    %22 = math.tanh %14 : vector<8x128xf32>
    %23 = arith.select %16, %21, %22 : vector<8x128xi1>, vector<8x128xf32>
    %24 = vector.extract_strided_slice %23 {offsets = [0, 0], sizes = [8, 32], strides = [1, 1]} : vector<8x128xf32> to vector<8x32xf32>
    %25 = vector.extract_strided_slice %23 {offsets = [0, 32], sizes = [8, 32], strides = [1, 1]} : vector<8x128xf32> to vector<8x32xf32>
    %26 = vector.extract_strided_slice %23 {offsets = [0, 64], sizes = [8, 32], strides = [1, 1]} : vector<8x128xf32> to vector<8x32xf32>
    %27 = vector.extract_strided_slice %23 {offsets = [0, 96], sizes = [8, 32], strides = [1, 1]} : vector<8x128xf32> to vector<8x32xf32>
    %28 = arith.mulf %25, %10 : vector<8x32xf32>
    %29 = arith.mulf %24, %27 : vector<8x32xf32>
    %30 = arith.addf %28, %29 : vector<8x32xf32>
    %31 = math.tanh %30 : vector<8x32xf32>
    %32 = arith.mulf %26, %31 : vector<8x32xf32>
    %33 = vector.extract_strided_slice %6 {offsets = [8, 0], sizes = [8, 128], strides = [1, 1]} : vector<64x128xf32> to vector<8x128xf32>
    %cst_15 = arith.constant dense<0.000000e+00> : vector<8x128xf32>
    %34 = tpu.matmul %32, %11, %cst_15 {dimension_numbers = #tpu.dot_dimension_numbers<[1], [0], [0], [1], [0, 0, 1, 1], [], []>} : vector<8x32xf32>, vector<32x128xf32>, vector<8x128xf32> -> vector<8x128xf32>
    %35 = arith.addf %33, %34 : vector<8x128xf32>
    %c96_i32_16 = arith.constant 96 : i32
    %36 = vector.broadcast %c96_i32_16 : i32 to vector<8x128xi32>
    %37 = arith.cmpi slt, %0, %36 : vector<8x128xi32>
    %38 = arith.negf %35 : vector<8x128xf32>
    %39 = math.exp %38 : vector<8x128xf32>
    %cst_17 = arith.constant 1.000000e+00 : f32
    %40 = vector.broadcast %cst_17 : f32 to vector<8x128xf32>
    %41 = arith.addf %40, %39 : vector<8x128xf32>
    %42 = arith.divf %40, %41 : vector<8x128xf32>
    %43 = math.tanh %35 : vector<8x128xf32>
    %44 = arith.select %37, %42, %43 : vector<8x128xi1>, vector<8x128xf32>
    %45 = vector.extract_strided_slice %44 {offsets = [0, 0], sizes = [8, 32], strides = [1, 1]} : vector<8x128xf32> to vector<8x32xf32>
    %46 = vector.extract_strided_slice %44 {offsets = [0, 32], sizes = [8, 32], strides = [1, 1]} : vector<8x128xf32> to vector<8x32xf32>
    %47 = vector.extract_strided_slice %44 {offsets = [0, 64], sizes = [8, 32], strides = [1, 1]} : vector<8x128xf32> to vector<8x32xf32>
    %48 = vector.extract_strided_slice %44 {offsets = [0, 96], sizes = [8, 32], strides = [1, 1]} : vector<8x128xf32> to vector<8x32xf32>
    %49 = arith.mulf %46, %30 : vector<8x32xf32>
    %50 = arith.mulf %45, %48 : vector<8x32xf32>
    %51 = arith.addf %49, %50 : vector<8x32xf32>
    %52 = math.tanh %51 : vector<8x32xf32>
    %53 = arith.mulf %47, %52 : vector<8x32xf32>
    %54 = vector.extract_strided_slice %6 {offsets = [16, 0], sizes = [8, 128], strides = [1, 1]} : vector<64x128xf32> to vector<8x128xf32>
    %cst_18 = arith.constant dense<0.000000e+00> : vector<8x128xf32>
    %55 = tpu.matmul %53, %11, %cst_18 {dimension_numbers = #tpu.dot_dimension_numbers<[1], [0], [0], [1], [0, 0, 1, 1], [], []>} : vector<8x32xf32>, vector<32x128xf32>, vector<8x128xf32> -> vector<8x128xf32>
    %56 = arith.addf %54, %55 : vector<8x128xf32>
    %c96_i32_19 = arith.constant 96 : i32
    %57 = vector.broadcast %c96_i32_19 : i32 to vector<8x128xi32>
    %58 = arith.cmpi slt, %0, %57 : vector<8x128xi32>
    %59 = arith.negf %56 : vector<8x128xf32>
    %60 = math.exp %59 : vector<8x128xf32>
    %cst_20 = arith.constant 1.000000e+00 : f32
    %61 = vector.broadcast %cst_20 : f32 to vector<8x128xf32>
    %62 = arith.addf %61, %60 : vector<8x128xf32>
    %63 = arith.divf %61, %62 : vector<8x128xf32>
    %64 = math.tanh %56 : vector<8x128xf32>
    %65 = arith.select %58, %63, %64 : vector<8x128xi1>, vector<8x128xf32>
    %66 = vector.extract_strided_slice %65 {offsets = [0, 0], sizes = [8, 32], strides = [1, 1]} : vector<8x128xf32> to vector<8x32xf32>
    %67 = vector.extract_strided_slice %65 {offsets = [0, 32], sizes = [8, 32], strides = [1, 1]} : vector<8x128xf32> to vector<8x32xf32>
    %68 = vector.extract_strided_slice %65 {offsets = [0, 64], sizes = [8, 32], strides = [1, 1]} : vector<8x128xf32> to vector<8x32xf32>
    %69 = vector.extract_strided_slice %65 {offsets = [0, 96], sizes = [8, 32], strides = [1, 1]} : vector<8x128xf32> to vector<8x32xf32>
    %70 = arith.mulf %67, %51 : vector<8x32xf32>
    %71 = arith.mulf %66, %69 : vector<8x32xf32>
    %72 = arith.addf %70, %71 : vector<8x32xf32>
    %73 = math.tanh %72 : vector<8x32xf32>
    %74 = arith.mulf %68, %73 : vector<8x32xf32>
    %75 = vector.extract_strided_slice %6 {offsets = [24, 0], sizes = [8, 128], strides = [1, 1]} : vector<64x128xf32> to vector<8x128xf32>
    %cst_21 = arith.constant dense<0.000000e+00> : vector<8x128xf32>
    %76 = tpu.matmul %74, %11, %cst_21 {dimension_numbers = #tpu.dot_dimension_numbers<[1], [0], [0], [1], [0, 0, 1, 1], [], []>} : vector<8x32xf32>, vector<32x128xf32>, vector<8x128xf32> -> vector<8x128xf32>
    %77 = arith.addf %75, %76 : vector<8x128xf32>
    %c96_i32_22 = arith.constant 96 : i32
    %78 = vector.broadcast %c96_i32_22 : i32 to vector<8x128xi32>
    %79 = arith.cmpi slt, %0, %78 : vector<8x128xi32>
    %80 = arith.negf %77 : vector<8x128xf32>
    %81 = math.exp %80 : vector<8x128xf32>
    %cst_23 = arith.constant 1.000000e+00 : f32
    %82 = vector.broadcast %cst_23 : f32 to vector<8x128xf32>
    %83 = arith.addf %82, %81 : vector<8x128xf32>
    %84 = arith.divf %82, %83 : vector<8x128xf32>
    %85 = math.tanh %77 : vector<8x128xf32>
    %86 = arith.select %79, %84, %85 : vector<8x128xi1>, vector<8x128xf32>
    %87 = vector.extract_strided_slice %86 {offsets = [0, 0], sizes = [8, 32], strides = [1, 1]} : vector<8x128xf32> to vector<8x32xf32>
    %88 = vector.extract_strided_slice %86 {offsets = [0, 32], sizes = [8, 32], strides = [1, 1]} : vector<8x128xf32> to vector<8x32xf32>
    %89 = vector.extract_strided_slice %86 {offsets = [0, 64], sizes = [8, 32], strides = [1, 1]} : vector<8x128xf32> to vector<8x32xf32>
    %90 = vector.extract_strided_slice %86 {offsets = [0, 96], sizes = [8, 32], strides = [1, 1]} : vector<8x128xf32> to vector<8x32xf32>
    %91 = arith.mulf %88, %72 : vector<8x32xf32>
    %92 = arith.mulf %87, %90 : vector<8x32xf32>
    %93 = arith.addf %91, %92 : vector<8x32xf32>
    %94 = math.tanh %93 : vector<8x32xf32>
    %95 = arith.mulf %89, %94 : vector<8x32xf32>
    %96 = vector.extract_strided_slice %6 {offsets = [32, 0], sizes = [8, 128], strides = [1, 1]} : vector<64x128xf32> to vector<8x128xf32>
    %cst_24 = arith.constant dense<0.000000e+00> : vector<8x128xf32>
    %97 = tpu.matmul %95, %11, %cst_24 {dimension_numbers = #tpu.dot_dimension_numbers<[1], [0], [0], [1], [0, 0, 1, 1], [], []>} : vector<8x32xf32>, vector<32x128xf32>, vector<8x128xf32> -> vector<8x128xf32>
    %98 = arith.addf %96, %97 : vector<8x128xf32>
    %c96_i32_25 = arith.constant 96 : i32
    %99 = vector.broadcast %c96_i32_25 : i32 to vector<8x128xi32>
    %100 = arith.cmpi slt, %0, %99 : vector<8x128xi32>
    %101 = arith.negf %98 : vector<8x128xf32>
    %102 = math.exp %101 : vector<8x128xf32>
    %cst_26 = arith.constant 1.000000e+00 : f32
    %103 = vector.broadcast %cst_26 : f32 to vector<8x128xf32>
    %104 = arith.addf %103, %102 : vector<8x128xf32>
    %105 = arith.divf %103, %104 : vector<8x128xf32>
    %106 = math.tanh %98 : vector<8x128xf32>
    %107 = arith.select %100, %105, %106 : vector<8x128xi1>, vector<8x128xf32>
    %108 = vector.extract_strided_slice %107 {offsets = [0, 0], sizes = [8, 32], strides = [1, 1]} : vector<8x128xf32> to vector<8x32xf32>
    %109 = vector.extract_strided_slice %107 {offsets = [0, 32], sizes = [8, 32], strides = [1, 1]} : vector<8x128xf32> to vector<8x32xf32>
    %110 = vector.extract_strided_slice %107 {offsets = [0, 64], sizes = [8, 32], strides = [1, 1]} : vector<8x128xf32> to vector<8x32xf32>
    %111 = vector.extract_strided_slice %107 {offsets = [0, 96], sizes = [8, 32], strides = [1, 1]} : vector<8x128xf32> to vector<8x32xf32>
    %112 = arith.mulf %109, %93 : vector<8x32xf32>
    %113 = arith.mulf %108, %111 : vector<8x32xf32>
    %114 = arith.addf %112, %113 : vector<8x32xf32>
    %115 = math.tanh %114 : vector<8x32xf32>
    %116 = arith.mulf %110, %115 : vector<8x32xf32>
    %117 = vector.extract_strided_slice %6 {offsets = [40, 0], sizes = [8, 128], strides = [1, 1]} : vector<64x128xf32> to vector<8x128xf32>
    %cst_27 = arith.constant dense<0.000000e+00> : vector<8x128xf32>
    %118 = tpu.matmul %116, %11, %cst_27 {dimension_numbers = #tpu.dot_dimension_numbers<[1], [0], [0], [1], [0, 0, 1, 1], [], []>} : vector<8x32xf32>, vector<32x128xf32>, vector<8x128xf32> -> vector<8x128xf32>
    %119 = arith.addf %117, %118 : vector<8x128xf32>
    %c96_i32_28 = arith.constant 96 : i32
    %120 = vector.broadcast %c96_i32_28 : i32 to vector<8x128xi32>
    %121 = arith.cmpi slt, %0, %120 : vector<8x128xi32>
    %122 = arith.negf %119 : vector<8x128xf32>
    %123 = math.exp %122 : vector<8x128xf32>
    %cst_29 = arith.constant 1.000000e+00 : f32
    %124 = vector.broadcast %cst_29 : f32 to vector<8x128xf32>
    %125 = arith.addf %124, %123 : vector<8x128xf32>
    %126 = arith.divf %124, %125 : vector<8x128xf32>
    %127 = math.tanh %119 : vector<8x128xf32>
    %128 = arith.select %121, %126, %127 : vector<8x128xi1>, vector<8x128xf32>
    %129 = vector.extract_strided_slice %128 {offsets = [0, 0], sizes = [8, 32], strides = [1, 1]} : vector<8x128xf32> to vector<8x32xf32>
    %130 = vector.extract_strided_slice %128 {offsets = [0, 32], sizes = [8, 32], strides = [1, 1]} : vector<8x128xf32> to vector<8x32xf32>
    %131 = vector.extract_strided_slice %128 {offsets = [0, 64], sizes = [8, 32], strides = [1, 1]} : vector<8x128xf32> to vector<8x32xf32>
    %132 = vector.extract_strided_slice %128 {offsets = [0, 96], sizes = [8, 32], strides = [1, 1]} : vector<8x128xf32> to vector<8x32xf32>
    %133 = arith.mulf %130, %114 : vector<8x32xf32>
    %134 = arith.mulf %129, %132 : vector<8x32xf32>
    %135 = arith.addf %133, %134 : vector<8x32xf32>
    %136 = math.tanh %135 : vector<8x32xf32>
    %137 = arith.mulf %131, %136 : vector<8x32xf32>
    %138 = vector.extract_strided_slice %6 {offsets = [48, 0], sizes = [8, 128], strides = [1, 1]} : vector<64x128xf32> to vector<8x128xf32>
    %cst_30 = arith.constant dense<0.000000e+00> : vector<8x128xf32>
    %139 = tpu.matmul %137, %11, %cst_30 {dimension_numbers = #tpu.dot_dimension_numbers<[1], [0], [0], [1], [0, 0, 1, 1], [], []>} : vector<8x32xf32>, vector<32x128xf32>, vector<8x128xf32> -> vector<8x128xf32>
    %140 = arith.addf %138, %139 : vector<8x128xf32>
    %c96_i32_31 = arith.constant 96 : i32
    %141 = vector.broadcast %c96_i32_31 : i32 to vector<8x128xi32>
    %142 = arith.cmpi slt, %0, %141 : vector<8x128xi32>
    %143 = arith.negf %140 : vector<8x128xf32>
    %144 = math.exp %143 : vector<8x128xf32>
    %cst_32 = arith.constant 1.000000e+00 : f32
    %145 = vector.broadcast %cst_32 : f32 to vector<8x128xf32>
    %146 = arith.addf %145, %144 : vector<8x128xf32>
    %147 = arith.divf %145, %146 : vector<8x128xf32>
    %148 = math.tanh %140 : vector<8x128xf32>
    %149 = arith.select %142, %147, %148 : vector<8x128xi1>, vector<8x128xf32>
    %150 = vector.extract_strided_slice %149 {offsets = [0, 0], sizes = [8, 32], strides = [1, 1]} : vector<8x128xf32> to vector<8x32xf32>
    %151 = vector.extract_strided_slice %149 {offsets = [0, 32], sizes = [8, 32], strides = [1, 1]} : vector<8x128xf32> to vector<8x32xf32>
    %152 = vector.extract_strided_slice %149 {offsets = [0, 64], sizes = [8, 32], strides = [1, 1]} : vector<8x128xf32> to vector<8x32xf32>
    %153 = vector.extract_strided_slice %149 {offsets = [0, 96], sizes = [8, 32], strides = [1, 1]} : vector<8x128xf32> to vector<8x32xf32>
    %154 = arith.mulf %151, %135 : vector<8x32xf32>
    %155 = arith.mulf %150, %153 : vector<8x32xf32>
    %156 = arith.addf %154, %155 : vector<8x32xf32>
    %157 = math.tanh %156 : vector<8x32xf32>
    %158 = arith.mulf %152, %157 : vector<8x32xf32>
    %159 = vector.extract_strided_slice %6 {offsets = [56, 0], sizes = [8, 128], strides = [1, 1]} : vector<64x128xf32> to vector<8x128xf32>
    %cst_33 = arith.constant dense<0.000000e+00> : vector<8x128xf32>
    %160 = tpu.matmul %158, %11, %cst_33 {dimension_numbers = #tpu.dot_dimension_numbers<[1], [0], [0], [1], [0, 0, 1, 1], [], []>} : vector<8x32xf32>, vector<32x128xf32>, vector<8x128xf32> -> vector<8x128xf32>
    %161 = arith.addf %159, %160 : vector<8x128xf32>
    %c96_i32_34 = arith.constant 96 : i32
    %162 = vector.broadcast %c96_i32_34 : i32 to vector<8x128xi32>
    %163 = arith.cmpi slt, %0, %162 : vector<8x128xi32>
    %164 = arith.negf %161 : vector<8x128xf32>
    %165 = math.exp %164 : vector<8x128xf32>
    %cst_35 = arith.constant 1.000000e+00 : f32
    %166 = vector.broadcast %cst_35 : f32 to vector<8x128xf32>
    %167 = arith.addf %166, %165 : vector<8x128xf32>
    %168 = arith.divf %166, %167 : vector<8x128xf32>
    %169 = math.tanh %161 : vector<8x128xf32>
    %170 = arith.select %163, %168, %169 : vector<8x128xi1>, vector<8x128xf32>
    %171 = vector.extract_strided_slice %170 {offsets = [0, 0], sizes = [8, 32], strides = [1, 1]} : vector<8x128xf32> to vector<8x32xf32>
    %172 = vector.extract_strided_slice %170 {offsets = [0, 32], sizes = [8, 32], strides = [1, 1]} : vector<8x128xf32> to vector<8x32xf32>
    %173 = vector.extract_strided_slice %170 {offsets = [0, 64], sizes = [8, 32], strides = [1, 1]} : vector<8x128xf32> to vector<8x32xf32>
    %174 = vector.extract_strided_slice %170 {offsets = [0, 96], sizes = [8, 32], strides = [1, 1]} : vector<8x128xf32> to vector<8x32xf32>
    %175 = arith.mulf %172, %156 : vector<8x32xf32>
    %176 = arith.mulf %171, %174 : vector<8x32xf32>
    %177 = arith.addf %175, %176 : vector<8x32xf32>
    %178 = math.tanh %177 : vector<8x32xf32>
    %179 = arith.mulf %173, %178 : vector<8x32xf32>
    %180 = tpu.concatenate %32, %179 in 1 : vector<8x32xf32>, vector<8x32xf32> -> vector<8x64xf32>
    %181 = tpu.concatenate %53, %158 in 1 : vector<8x32xf32>, vector<8x32xf32> -> vector<8x64xf32>
    %182 = tpu.concatenate %74, %137 in 1 : vector<8x32xf32>, vector<8x32xf32> -> vector<8x64xf32>
    %183 = tpu.concatenate %95, %116 in 1 : vector<8x32xf32>, vector<8x32xf32> -> vector<8x64xf32>
    %184 = tpu.concatenate %116, %95 in 1 : vector<8x32xf32>, vector<8x32xf32> -> vector<8x64xf32>
    %185 = tpu.concatenate %137, %74 in 1 : vector<8x32xf32>, vector<8x32xf32> -> vector<8x64xf32>
    %186 = tpu.concatenate %158, %53 in 1 : vector<8x32xf32>, vector<8x32xf32> -> vector<8x64xf32>
    %187 = tpu.concatenate %179, %32 in 1 : vector<8x32xf32>, vector<8x32xf32> -> vector<8x64xf32>
    %188 = tpu.concatenate %180, %181, %182, %183, %184, %185, %186, %187 in 0 : vector<8x64xf32>, vector<8x64xf32>, vector<8x64xf32>, vector<8x64xf32>, vector<8x64xf32>, vector<8x64xf32>, vector<8x64xf32>, vector<8x64xf32> -> vector<64x64xf32>
    %c0_36 = arith.constant 0 : index
    %c0_37 = arith.constant 0 : index
    %189 = vector.load %arg4[%c0_36, %c0_37] : memref<64x128xf32, #tpu.memory_space<vmem>>, vector<64x128xf32>
    %cst_38 = arith.constant dense<0.000000e+00> : vector<64x128xf32>
    %190 = tpu.matmul %188, %189, %cst_38 {dimension_numbers = #tpu.dot_dimension_numbers<[1], [0], [0], [1], [0, 0, 1, 1], [], []>} : vector<64x64xf32>, vector<64x128xf32>, vector<64x128xf32> -> vector<64x128xf32>
    %c0_39 = arith.constant 0 : index
    %c0_40 = arith.constant 0 : index
    %191 = vector.load %arg8[%c0_39, %c0_40] : memref<1x128xf32, #tpu.memory_space<vmem>>, vector<1x128xf32>
    %192 = vector.broadcast %191 : vector<1x128xf32> to vector<64x128xf32>
    %193 = arith.addf %190, %192 : vector<64x128xf32>
    %c1 = arith.constant 1 : index
    %c0_41 = arith.constant 0 : index
    %c0_42 = arith.constant 0 : index
    %194 = vector.load %arg1[%c1, %c0_41, %c0_42] : memref<2x8x32xf32, #tpu.memory_space<vmem>>, vector<1x8x32xf32>
    %195 = vector.shape_cast %194 : vector<1x8x32xf32> to vector<8x32xf32>
    %c1_43 = arith.constant 1 : index
    %c0_44 = arith.constant 0 : index
    %c0_45 = arith.constant 0 : index
    %196 = vector.load %arg2[%c1_43, %c0_44, %c0_45] : memref<2x8x32xf32, #tpu.memory_space<vmem>>, vector<1x8x32xf32>
    %197 = vector.shape_cast %196 : vector<1x8x32xf32> to vector<8x32xf32>
    %c0_46 = arith.constant 0 : index
    %c0_47 = arith.constant 0 : index
    %198 = vector.load %arg6[%c0_46, %c0_47] : memref<32x128xf32, #tpu.memory_space<vmem>>, vector<32x128xf32>
    %199 = vector.extract_strided_slice %193 {offsets = [0, 0], sizes = [8, 128], strides = [1, 1]} : vector<64x128xf32> to vector<8x128xf32>
    %cst_48 = arith.constant dense<0.000000e+00> : vector<8x128xf32>
    %200 = tpu.matmul %195, %198, %cst_48 {dimension_numbers = #tpu.dot_dimension_numbers<[1], [0], [0], [1], [0, 0, 1, 1], [], []>} : vector<8x32xf32>, vector<32x128xf32>, vector<8x128xf32> -> vector<8x128xf32>
    %201 = arith.addf %199, %200 : vector<8x128xf32>
    %c96_i32_49 = arith.constant 96 : i32
    %202 = vector.broadcast %c96_i32_49 : i32 to vector<8x128xi32>
    %203 = arith.cmpi slt, %0, %202 : vector<8x128xi32>
    %204 = arith.negf %201 : vector<8x128xf32>
    %205 = math.exp %204 : vector<8x128xf32>
    %cst_50 = arith.constant 1.000000e+00 : f32
    %206 = vector.broadcast %cst_50 : f32 to vector<8x128xf32>
    %207 = arith.addf %206, %205 : vector<8x128xf32>
    %208 = arith.divf %206, %207 : vector<8x128xf32>
    %209 = math.tanh %201 : vector<8x128xf32>
    %210 = arith.select %203, %208, %209 : vector<8x128xi1>, vector<8x128xf32>
    %211 = vector.extract_strided_slice %210 {offsets = [0, 0], sizes = [8, 32], strides = [1, 1]} : vector<8x128xf32> to vector<8x32xf32>
    %212 = vector.extract_strided_slice %210 {offsets = [0, 32], sizes = [8, 32], strides = [1, 1]} : vector<8x128xf32> to vector<8x32xf32>
    %213 = vector.extract_strided_slice %210 {offsets = [0, 64], sizes = [8, 32], strides = [1, 1]} : vector<8x128xf32> to vector<8x32xf32>
    %214 = vector.extract_strided_slice %210 {offsets = [0, 96], sizes = [8, 32], strides = [1, 1]} : vector<8x128xf32> to vector<8x32xf32>
    %215 = arith.mulf %212, %197 : vector<8x32xf32>
    %216 = arith.mulf %211, %214 : vector<8x32xf32>
    %217 = arith.addf %215, %216 : vector<8x32xf32>
    %218 = math.tanh %217 : vector<8x32xf32>
    %219 = arith.mulf %213, %218 : vector<8x32xf32>
    %220 = vector.extract_strided_slice %193 {offsets = [8, 0], sizes = [8, 128], strides = [1, 1]} : vector<64x128xf32> to vector<8x128xf32>
    %cst_51 = arith.constant dense<0.000000e+00> : vector<8x128xf32>
    %221 = tpu.matmul %219, %198, %cst_51 {dimension_numbers = #tpu.dot_dimension_numbers<[1], [0], [0], [1], [0, 0, 1, 1], [], []>} : vector<8x32xf32>, vector<32x128xf32>, vector<8x128xf32> -> vector<8x128xf32>
    %222 = arith.addf %220, %221 : vector<8x128xf32>
    %c96_i32_52 = arith.constant 96 : i32
    %223 = vector.broadcast %c96_i32_52 : i32 to vector<8x128xi32>
    %224 = arith.cmpi slt, %0, %223 : vector<8x128xi32>
    %225 = arith.negf %222 : vector<8x128xf32>
    %226 = math.exp %225 : vector<8x128xf32>
    %cst_53 = arith.constant 1.000000e+00 : f32
    %227 = vector.broadcast %cst_53 : f32 to vector<8x128xf32>
    %228 = arith.addf %227, %226 : vector<8x128xf32>
    %229 = arith.divf %227, %228 : vector<8x128xf32>
    %230 = math.tanh %222 : vector<8x128xf32>
    %231 = arith.select %224, %229, %230 : vector<8x128xi1>, vector<8x128xf32>
    %232 = vector.extract_strided_slice %231 {offsets = [0, 0], sizes = [8, 32], strides = [1, 1]} : vector<8x128xf32> to vector<8x32xf32>
    %233 = vector.extract_strided_slice %231 {offsets = [0, 32], sizes = [8, 32], strides = [1, 1]} : vector<8x128xf32> to vector<8x32xf32>
    %234 = vector.extract_strided_slice %231 {offsets = [0, 64], sizes = [8, 32], strides = [1, 1]} : vector<8x128xf32> to vector<8x32xf32>
    %235 = vector.extract_strided_slice %231 {offsets = [0, 96], sizes = [8, 32], strides = [1, 1]} : vector<8x128xf32> to vector<8x32xf32>
    %236 = arith.mulf %233, %217 : vector<8x32xf32>
    %237 = arith.mulf %232, %235 : vector<8x32xf32>
    %238 = arith.addf %236, %237 : vector<8x32xf32>
    %239 = math.tanh %238 : vector<8x32xf32>
    %240 = arith.mulf %234, %239 : vector<8x32xf32>
    %241 = vector.extract_strided_slice %193 {offsets = [16, 0], sizes = [8, 128], strides = [1, 1]} : vector<64x128xf32> to vector<8x128xf32>
    %cst_54 = arith.constant dense<0.000000e+00> : vector<8x128xf32>
    %242 = tpu.matmul %240, %198, %cst_54 {dimension_numbers = #tpu.dot_dimension_numbers<[1], [0], [0], [1], [0, 0, 1, 1], [], []>} : vector<8x32xf32>, vector<32x128xf32>, vector<8x128xf32> -> vector<8x128xf32>
    %243 = arith.addf %241, %242 : vector<8x128xf32>
    %c96_i32_55 = arith.constant 96 : i32
    %244 = vector.broadcast %c96_i32_55 : i32 to vector<8x128xi32>
    %245 = arith.cmpi slt, %0, %244 : vector<8x128xi32>
    %246 = arith.negf %243 : vector<8x128xf32>
    %247 = math.exp %246 : vector<8x128xf32>
    %cst_56 = arith.constant 1.000000e+00 : f32
    %248 = vector.broadcast %cst_56 : f32 to vector<8x128xf32>
    %249 = arith.addf %248, %247 : vector<8x128xf32>
    %250 = arith.divf %248, %249 : vector<8x128xf32>
    %251 = math.tanh %243 : vector<8x128xf32>
    %252 = arith.select %245, %250, %251 : vector<8x128xi1>, vector<8x128xf32>
    %253 = vector.extract_strided_slice %252 {offsets = [0, 0], sizes = [8, 32], strides = [1, 1]} : vector<8x128xf32> to vector<8x32xf32>
    %254 = vector.extract_strided_slice %252 {offsets = [0, 32], sizes = [8, 32], strides = [1, 1]} : vector<8x128xf32> to vector<8x32xf32>
    %255 = vector.extract_strided_slice %252 {offsets = [0, 64], sizes = [8, 32], strides = [1, 1]} : vector<8x128xf32> to vector<8x32xf32>
    %256 = vector.extract_strided_slice %252 {offsets = [0, 96], sizes = [8, 32], strides = [1, 1]} : vector<8x128xf32> to vector<8x32xf32>
    %257 = arith.mulf %254, %238 : vector<8x32xf32>
    %258 = arith.mulf %253, %256 : vector<8x32xf32>
    %259 = arith.addf %257, %258 : vector<8x32xf32>
    %260 = math.tanh %259 : vector<8x32xf32>
    %261 = arith.mulf %255, %260 : vector<8x32xf32>
    %262 = vector.extract_strided_slice %193 {offsets = [24, 0], sizes = [8, 128], strides = [1, 1]} : vector<64x128xf32> to vector<8x128xf32>
    %cst_57 = arith.constant dense<0.000000e+00> : vector<8x128xf32>
    %263 = tpu.matmul %261, %198, %cst_57 {dimension_numbers = #tpu.dot_dimension_numbers<[1], [0], [0], [1], [0, 0, 1, 1], [], []>} : vector<8x32xf32>, vector<32x128xf32>, vector<8x128xf32> -> vector<8x128xf32>
    %264 = arith.addf %262, %263 : vector<8x128xf32>
    %c96_i32_58 = arith.constant 96 : i32
    %265 = vector.broadcast %c96_i32_58 : i32 to vector<8x128xi32>
    %266 = arith.cmpi slt, %0, %265 : vector<8x128xi32>
    %267 = arith.negf %264 : vector<8x128xf32>
    %268 = math.exp %267 : vector<8x128xf32>
    %cst_59 = arith.constant 1.000000e+00 : f32
    %269 = vector.broadcast %cst_59 : f32 to vector<8x128xf32>
    %270 = arith.addf %269, %268 : vector<8x128xf32>
    %271 = arith.divf %269, %270 : vector<8x128xf32>
    %272 = math.tanh %264 : vector<8x128xf32>
    %273 = arith.select %266, %271, %272 : vector<8x128xi1>, vector<8x128xf32>
    %274 = vector.extract_strided_slice %273 {offsets = [0, 0], sizes = [8, 32], strides = [1, 1]} : vector<8x128xf32> to vector<8x32xf32>
    %275 = vector.extract_strided_slice %273 {offsets = [0, 32], sizes = [8, 32], strides = [1, 1]} : vector<8x128xf32> to vector<8x32xf32>
    %276 = vector.extract_strided_slice %273 {offsets = [0, 64], sizes = [8, 32], strides = [1, 1]} : vector<8x128xf32> to vector<8x32xf32>
    %277 = vector.extract_strided_slice %273 {offsets = [0, 96], sizes = [8, 32], strides = [1, 1]} : vector<8x128xf32> to vector<8x32xf32>
    %278 = arith.mulf %275, %259 : vector<8x32xf32>
    %279 = arith.mulf %274, %277 : vector<8x32xf32>
    %280 = arith.addf %278, %279 : vector<8x32xf32>
    %281 = math.tanh %280 : vector<8x32xf32>
    %282 = arith.mulf %276, %281 : vector<8x32xf32>
    %283 = vector.extract_strided_slice %193 {offsets = [32, 0], sizes = [8, 128], strides = [1, 1]} : vector<64x128xf32> to vector<8x128xf32>
    %cst_60 = arith.constant dense<0.000000e+00> : vector<8x128xf32>
    %284 = tpu.matmul %282, %198, %cst_60 {dimension_numbers = #tpu.dot_dimension_numbers<[1], [0], [0], [1], [0, 0, 1, 1], [], []>} : vector<8x32xf32>, vector<32x128xf32>, vector<8x128xf32> -> vector<8x128xf32>
    %285 = arith.addf %283, %284 : vector<8x128xf32>
    %c96_i32_61 = arith.constant 96 : i32
    %286 = vector.broadcast %c96_i32_61 : i32 to vector<8x128xi32>
    %287 = arith.cmpi slt, %0, %286 : vector<8x128xi32>
    %288 = arith.negf %285 : vector<8x128xf32>
    %289 = math.exp %288 : vector<8x128xf32>
    %cst_62 = arith.constant 1.000000e+00 : f32
    %290 = vector.broadcast %cst_62 : f32 to vector<8x128xf32>
    %291 = arith.addf %290, %289 : vector<8x128xf32>
    %292 = arith.divf %290, %291 : vector<8x128xf32>
    %293 = math.tanh %285 : vector<8x128xf32>
    %294 = arith.select %287, %292, %293 : vector<8x128xi1>, vector<8x128xf32>
    %295 = vector.extract_strided_slice %294 {offsets = [0, 0], sizes = [8, 32], strides = [1, 1]} : vector<8x128xf32> to vector<8x32xf32>
    %296 = vector.extract_strided_slice %294 {offsets = [0, 32], sizes = [8, 32], strides = [1, 1]} : vector<8x128xf32> to vector<8x32xf32>
    %297 = vector.extract_strided_slice %294 {offsets = [0, 64], sizes = [8, 32], strides = [1, 1]} : vector<8x128xf32> to vector<8x32xf32>
    %298 = vector.extract_strided_slice %294 {offsets = [0, 96], sizes = [8, 32], strides = [1, 1]} : vector<8x128xf32> to vector<8x32xf32>
    %299 = arith.mulf %296, %280 : vector<8x32xf32>
    %300 = arith.mulf %295, %298 : vector<8x32xf32>
    %301 = arith.addf %299, %300 : vector<8x32xf32>
    %302 = math.tanh %301 : vector<8x32xf32>
    %303 = arith.mulf %297, %302 : vector<8x32xf32>
    %304 = vector.extract_strided_slice %193 {offsets = [40, 0], sizes = [8, 128], strides = [1, 1]} : vector<64x128xf32> to vector<8x128xf32>
    %cst_63 = arith.constant dense<0.000000e+00> : vector<8x128xf32>
    %305 = tpu.matmul %303, %198, %cst_63 {dimension_numbers = #tpu.dot_dimension_numbers<[1], [0], [0], [1], [0, 0, 1, 1], [], []>} : vector<8x32xf32>, vector<32x128xf32>, vector<8x128xf32> -> vector<8x128xf32>
    %306 = arith.addf %304, %305 : vector<8x128xf32>
    %c96_i32_64 = arith.constant 96 : i32
    %307 = vector.broadcast %c96_i32_64 : i32 to vector<8x128xi32>
    %308 = arith.cmpi slt, %0, %307 : vector<8x128xi32>
    %309 = arith.negf %306 : vector<8x128xf32>
    %310 = math.exp %309 : vector<8x128xf32>
    %cst_65 = arith.constant 1.000000e+00 : f32
    %311 = vector.broadcast %cst_65 : f32 to vector<8x128xf32>
    %312 = arith.addf %311, %310 : vector<8x128xf32>
    %313 = arith.divf %311, %312 : vector<8x128xf32>
    %314 = math.tanh %306 : vector<8x128xf32>
    %315 = arith.select %308, %313, %314 : vector<8x128xi1>, vector<8x128xf32>
    %316 = vector.extract_strided_slice %315 {offsets = [0, 0], sizes = [8, 32], strides = [1, 1]} : vector<8x128xf32> to vector<8x32xf32>
    %317 = vector.extract_strided_slice %315 {offsets = [0, 32], sizes = [8, 32], strides = [1, 1]} : vector<8x128xf32> to vector<8x32xf32>
    %318 = vector.extract_strided_slice %315 {offsets = [0, 64], sizes = [8, 32], strides = [1, 1]} : vector<8x128xf32> to vector<8x32xf32>
    %319 = vector.extract_strided_slice %315 {offsets = [0, 96], sizes = [8, 32], strides = [1, 1]} : vector<8x128xf32> to vector<8x32xf32>
    %320 = arith.mulf %317, %301 : vector<8x32xf32>
    %321 = arith.mulf %316, %319 : vector<8x32xf32>
    %322 = arith.addf %320, %321 : vector<8x32xf32>
    %323 = math.tanh %322 : vector<8x32xf32>
    %324 = arith.mulf %318, %323 : vector<8x32xf32>
    %325 = vector.extract_strided_slice %193 {offsets = [48, 0], sizes = [8, 128], strides = [1, 1]} : vector<64x128xf32> to vector<8x128xf32>
    %cst_66 = arith.constant dense<0.000000e+00> : vector<8x128xf32>
    %326 = tpu.matmul %324, %198, %cst_66 {dimension_numbers = #tpu.dot_dimension_numbers<[1], [0], [0], [1], [0, 0, 1, 1], [], []>} : vector<8x32xf32>, vector<32x128xf32>, vector<8x128xf32> -> vector<8x128xf32>
    %327 = arith.addf %325, %326 : vector<8x128xf32>
    %c96_i32_67 = arith.constant 96 : i32
    %328 = vector.broadcast %c96_i32_67 : i32 to vector<8x128xi32>
    %329 = arith.cmpi slt, %0, %328 : vector<8x128xi32>
    %330 = arith.negf %327 : vector<8x128xf32>
    %331 = math.exp %330 : vector<8x128xf32>
    %cst_68 = arith.constant 1.000000e+00 : f32
    %332 = vector.broadcast %cst_68 : f32 to vector<8x128xf32>
    %333 = arith.addf %332, %331 : vector<8x128xf32>
    %334 = arith.divf %332, %333 : vector<8x128xf32>
    %335 = math.tanh %327 : vector<8x128xf32>
    %336 = arith.select %329, %334, %335 : vector<8x128xi1>, vector<8x128xf32>
    %337 = vector.extract_strided_slice %336 {offsets = [0, 0], sizes = [8, 32], strides = [1, 1]} : vector<8x128xf32> to vector<8x32xf32>
    %338 = vector.extract_strided_slice %336 {offsets = [0, 32], sizes = [8, 32], strides = [1, 1]} : vector<8x128xf32> to vector<8x32xf32>
    %339 = vector.extract_strided_slice %336 {offsets = [0, 64], sizes = [8, 32], strides = [1, 1]} : vector<8x128xf32> to vector<8x32xf32>
    %340 = vector.extract_strided_slice %336 {offsets = [0, 96], sizes = [8, 32], strides = [1, 1]} : vector<8x128xf32> to vector<8x32xf32>
    %341 = arith.mulf %338, %322 : vector<8x32xf32>
    %342 = arith.mulf %337, %340 : vector<8x32xf32>
    %343 = arith.addf %341, %342 : vector<8x32xf32>
    %344 = math.tanh %343 : vector<8x32xf32>
    %345 = arith.mulf %339, %344 : vector<8x32xf32>
    %346 = vector.extract_strided_slice %193 {offsets = [56, 0], sizes = [8, 128], strides = [1, 1]} : vector<64x128xf32> to vector<8x128xf32>
    %cst_69 = arith.constant dense<0.000000e+00> : vector<8x128xf32>
    %347 = tpu.matmul %345, %198, %cst_69 {dimension_numbers = #tpu.dot_dimension_numbers<[1], [0], [0], [1], [0, 0, 1, 1], [], []>} : vector<8x32xf32>, vector<32x128xf32>, vector<8x128xf32> -> vector<8x128xf32>
    %348 = arith.addf %346, %347 : vector<8x128xf32>
    %c96_i32_70 = arith.constant 96 : i32
    %349 = vector.broadcast %c96_i32_70 : i32 to vector<8x128xi32>
    %350 = arith.cmpi slt, %0, %349 : vector<8x128xi32>
    %351 = arith.negf %348 : vector<8x128xf32>
    %352 = math.exp %351 : vector<8x128xf32>
    %cst_71 = arith.constant 1.000000e+00 : f32
    %353 = vector.broadcast %cst_71 : f32 to vector<8x128xf32>
    %354 = arith.addf %353, %352 : vector<8x128xf32>
    %355 = arith.divf %353, %354 : vector<8x128xf32>
    %356 = math.tanh %348 : vector<8x128xf32>
    %357 = arith.select %350, %355, %356 : vector<8x128xi1>, vector<8x128xf32>
    %358 = vector.extract_strided_slice %357 {offsets = [0, 0], sizes = [8, 32], strides = [1, 1]} : vector<8x128xf32> to vector<8x32xf32>
    %359 = vector.extract_strided_slice %357 {offsets = [0, 32], sizes = [8, 32], strides = [1, 1]} : vector<8x128xf32> to vector<8x32xf32>
    %360 = vector.extract_strided_slice %357 {offsets = [0, 64], sizes = [8, 32], strides = [1, 1]} : vector<8x128xf32> to vector<8x32xf32>
    %361 = vector.extract_strided_slice %357 {offsets = [0, 96], sizes = [8, 32], strides = [1, 1]} : vector<8x128xf32> to vector<8x32xf32>
    %362 = arith.mulf %359, %343 : vector<8x32xf32>
    %363 = arith.mulf %358, %361 : vector<8x32xf32>
    %364 = arith.addf %362, %363 : vector<8x32xf32>
    %365 = math.tanh %364 : vector<8x32xf32>
    %366 = arith.mulf %360, %365 : vector<8x32xf32>
    %367 = tpu.iota {dimensions = array<i32: 1>} : vector<8x32xi32>
    %c16_i32 = arith.constant 16 : i32
    %368 = vector.broadcast %c16_i32 : i32 to vector<8x32xi32>
    %369 = arith.cmpi slt, %367, %368 : vector<8x32xi32>
    %370 = arith.select %369, %366, %219 : vector<8x32xi1>, vector<8x32xf32>
    %c0_72 = arith.constant 0 : index
    %c0_73 = arith.constant 0 : index
    %371 = vector.load %arg9[%c0_72, %c0_73] : memref<1x32xf32, #tpu.memory_space<vmem>>, vector<1x32xf32>
    %372 = vector.broadcast %371 : vector<1x32xf32> to vector<8x32xf32>
    %373 = arith.mulf %370, %372 : vector<8x32xf32>
    %cst_74 = arith.constant dense<0.000000e+00> : vector<8xf32>
    %374 = vector.multi_reduction <add>, %373, %cst_74 [1] : vector<8x32xf32> to vector<8xf32>
    %375 = vector.shape_cast %374 : vector<8xf32> to vector<8x1xf32>
    %c0_75 = arith.constant 0 : index
    %c0_76 = arith.constant 0 : index
    %376 = vector.load %arg10[%c0_75, %c0_76] : memref<1x1xf32, #tpu.memory_space<vmem>>, vector<1x1xf32>
    %377 = vector.broadcast %376 : vector<1x1xf32> to vector<8x1xf32>
    %378 = arith.addf %375, %377 : vector<8x1xf32>
    %c0_77 = arith.constant 0 : index
    %c0_78 = arith.constant 0 : index
    %379 = vector.load %arg11[%c0_77, %c0_78] : memref<8x1xf32, #tpu.memory_space<vmem>>, vector<8x1xf32>
    tpu.vector_store %arg11[%c0_77, %c0_78], %378 {strides = array<i32>} : memref<8x1xf32, #tpu.memory_space<vmem>>, vector<8x1xf32>,
    %380 = tpu.concatenate %179, %366, %177, %364 in 1 : vector<8x32xf32>, vector<8x32xf32>, vector<8x32xf32>, vector<8x32xf32> -> vector<8x128xf32>
    %c0_79 = arith.constant 0 : index
    %c0_80 = arith.constant 0 : index
    %381 = vector.load %arg12[%c0_79, %c0_80] : memref<8x128xf32, #tpu.memory_space<vmem>>, vector<8x128xf32>
    tpu.vector_store %arg12[%c0_79, %c0_80], %380 {strides = array<i32>} : memref<8x128xf32, #tpu.memory_space<vmem>>, vector<8x128xf32>,
    return
  }
}

</mosaic_0001>

<llo_original>
// kernel: bilstm_forward.1
$region0: #{bilstm_forward.1}
  #allocation0 [shape = 'u32[]', space=smem, size = 0x4, offset = 0x4, fixed_abs, tag = 'smem constant byte address 0x4 - core index']
  #allocation1 [shape = 'u32[72,128]{1,0:T(1,128)}', space=vmem, size = 0x9000, scoped, tag = 'internal scratch']
  #allocation2 [shape = 'f32[1,1]{1,0:T(1,128)S(1)}', space=vmem, size = 0x200, scoped, tag = 'scoped memory for bilstm_forward.1']
  %s0 = inlined_call_operand.vmem [shape: f32[64,16], index: 0, kind: input, shape index: {}]
  %s1 = inlined_call_operand.vmem [shape: f32[2,8,32], index: 1, kind: input, shape index: {}]
  %s2 = inlined_call_operand.vmem [shape: f32[2,8,32], index: 2, kind: input, shape index: {}]
  %s3 = inlined_call_operand.vmem [shape: f32[16,128], index: 3, kind: input, shape index: {}]
  %s4 = inlined_call_operand.vmem [shape: f32[64,128], index: 4, kind: input, shape index: {}]
  %s5 = inlined_call_operand.vmem [shape: f32[32,128], index: 5, kind: input, shape index: {}]
  %s6 = inlined_call_operand.vmem [shape: f32[32,128], index: 6, kind: input, shape index: {}]
  %s7 = inlined_call_operand.vmem [shape: f32[1,128], index: 7, kind: input, shape index: {}]
  %s8 = inlined_call_operand.vmem [shape: f32[1,128], index: 8, kind: input, shape index: {}]
  %s9 = inlined_call_operand.vmem [shape: f32[1,32], index: 9, kind: input, shape index: {}]
  %s10 = inlined_call_operand.<no memory space> [shape: f32[1,1], index: 10, kind: input, shape index: {}]
  %s11 = inlined_call_operand.vmem [shape: f32[8,1], index: 11, kind: output, shape index: {0}]
  %s12 = inlined_call_operand.vmem [shape: f32[8,128], index: 12, kind: output, shape index: {1}]
  %13 = xla_tuple %s11, %s12
  %s14 = sld [smem:[#allocation0]]
  $region62: #{bilstm_forward.1} parent=0
    _
  %s16 = ssub.s32 1, %s14
  %s17 = scalar_select 0, %s16, %s14
  %v18 = vstv %s10
  %19 = vst [vmem:[#allocation2] sm:$0x1] %v18
  // Predicated region
  $region2: #{bilstm_forward.1} parent=0 // pred_check
    _
  $region3: #{bilstm_forward.1} parent=0 // pred_check_branch
    %21 = sbr.rel (0) target = $region5
  $region4: #{bilstm_forward.1} parent=0 // pred_region
    _
  $region5: #{bilstm_forward.1} parent=0 // pred_fallthru
    _
  // Predicated region
  $region6: #{bilstm_forward.1} parent=0 // pred_check
    _
  $region7: #{bilstm_forward.1} parent=0 // pred_check_branch
    %23 = sbr.rel (0) target = $region9
  $region8: #{bilstm_forward.1} parent=0 // pred_region
    _
  $region9: #{bilstm_forward.1} parent=0 // pred_fallthru
    _
  // Predicated region
  $region10: #{bilstm_forward.1} parent=0 // pred_check
    _
  $region11: #{bilstm_forward.1} parent=0 // pred_check_branch
    %25 = sbr.rel (0) target = $region13
  $region12: #{bilstm_forward.1} parent=0 // pred_region
    _
  $region13: #{bilstm_forward.1} parent=0 // pred_fallthru
    _
  // Predicated region
  $region14: #{bilstm_forward.1} parent=0 // pred_check
    _
  $region15: #{bilstm_forward.1} parent=0 // pred_check_branch
    %27 = sbr.rel (0) target = $region17
  $region16: #{bilstm_forward.1} parent=0 // pred_region
    _
  $region17: #{bilstm_forward.1} parent=0 // pred_fallthru
    _
  // Predicated region
  $region18: #{bilstm_forward.1} parent=0 // pred_check
    _
  $region19: #{bilstm_forward.1} parent=0 // pred_check_branch
    %29 = sbr.rel (0) target = $region21
  $region20: #{bilstm_forward.1} parent=0 // pred_region
    _
  $region21: #{bilstm_forward.1} parent=0 // pred_fallthru
    _
  // Predicated region
  $region22: #{bilstm_forward.1} parent=0 // pred_check
    _
  $region23: #{bilstm_forward.1} parent=0 // pred_check_branch
    %31 = sbr.rel (0) target = $region25
  $region24: #{bilstm_forward.1} parent=0 // pred_region
    _
  $region25: #{bilstm_forward.1} parent=0 // pred_fallthru
    _
  // Predicated region
  $region26: #{bilstm_forward.1} parent=0 // pred_check
    _
  $region27: #{bilstm_forward.1} parent=0 // pred_check_branch
    %33 = sbr.rel (0) target = $region29
  $region28: #{bilstm_forward.1} parent=0 // pred_region
    _
  $region29: #{bilstm_forward.1} parent=0 // pred_fallthru
    _
  // Predicated region
  $region30: #{bilstm_forward.1} parent=0 // pred_check
    _
  $region31: #{bilstm_forward.1} parent=0 // pred_check_branch
    %35 = sbr.rel (0) target = $region33
  $region32: #{bilstm_forward.1} parent=0 // pred_region
    _
  $region33: #{bilstm_forward.1} parent=0 // pred_fallthru
    _
  // Predicated region
  $region34: #{bilstm_forward.1} parent=0 // pred_check
    _
  $region35: #{bilstm_forward.1} parent=0 // pred_check_branch
    %37 = sbr.rel (0) target = $region37
  $region36: #{bilstm_forward.1} parent=0 // pred_region
    _
  $region37: #{bilstm_forward.1} parent=0 // pred_fallthru
    _
  // Predicated region
  $region38: #{bilstm_forward.1} parent=0 // pred_check
    _
  $region39: #{bilstm_forward.1} parent=0 // pred_check_branch
    %39 = sbr.rel (0) target = $region41
  $region40: #{bilstm_forward.1} parent=0 // pred_region
    _
  $region41: #{bilstm_forward.1} parent=0 // pred_fallthru
    _
  // Predicated region
  $region42: #{bilstm_forward.1} parent=0 // pred_check
    _
  $region43: #{bilstm_forward.1} parent=0 // pred_check_branch
    %41 = sbr.rel (0) target = $region45
  $region44: #{bilstm_forward.1} parent=0 // pred_region
    _
  $region45: #{bilstm_forward.1} parent=0 // pred_fallthru
    _
  %v42 = vlaneseq
  %v43 = vand.u32 %v42, 127
  %v44 = vld [vmem:[%s0] sm:$0xff]
  %v45 = vld [vmem:[%s0 + $0x8] sm:$0xff]
  %v46 = vld [vmem:[%s0 + $0x10] sm:$0xff]
  %v47 = vld [vmem:[%s0 + $0x18] sm:$0xff]
  %v48 = vld [vmem:[%s0 + $0x20] sm:$0xff]
  %v49 = vld [vmem:[%s0 + $0x28] sm:$0xff]
  %v50 = vld [vmem:[%s0 + $0x30] sm:$0xff]
  %v51 = vld [vmem:[%s0 + $0x38] sm:$0xff]
  %v52 = vld [vmem:[%s3] sm:$0xff]
  %v53 = vld [vmem:[%s3 + $0x8] sm:$0xff]
  %v54 = vld [vmem:[%s7] sm:$0x1]
  %v56 = vperm.slane %v54, 0
  %vm58 = vcmask 130048
  %v60 = vsel %vm58, %v44, 0
  %v63 = vsel %vm58, %v45, 0
  %v66 = vsel %vm58, %v46, 0
  %v69 = vsel %vm58, %v47, 0
  %v72 = vsel %vm58, %v48, 0
  %v75 = vsel %vm58, %v49, 0
  %v78 = vsel %vm58, %v50, 0
  %v81 = vsel %vm58, %v51, 0
  %83 = vmatpush.msra.mxu0 0.0
  %84 = vmatpush.msra.mxu0 0.0
  %85 = vmatpush.msra.mxu0 0.0
  %86 = vmatpush.msra.mxu0 0.0
  %87 = vmatpush.msra.mxu0 0.0
  %88 = vmatpush.msra.mxu0 0.0
  %89 = vmatpush.msra.mxu0 0.0
  %90 = vmatpush.msra.mxu0 0.0
  %91 = vmatpush.msra.mxu0 0.0
  %92 = vmatpush.msra.mxu0 0.0
  %93 = vmatpush.msra.mxu0 0.0
  %94 = vmatpush.msra.mxu0 0.0
  %95 = vmatpush.msra.mxu0 0.0
  %96 = vmatpush.msra.mxu0 0.0
  %97 = vmatpush.msra.mxu0 %v53
  %98 = vmatpush.msra.mxu0 %v52
  %99 = vmatmul.f32.gmra.mxu0 %v60
  %v100 = vpop.f32.mrf.mxu0
  %v101 = vadd.f32 %v56, %v100
  %102 = vmatmul.f32.gmra.mxu0 %v63
  %v103 = vpop.f32.mrf.mxu0
  %v104 = vadd.f32 %v56, %v103
  %105 = vmatmul.f32.gmra.mxu0 %v66
  %v106 = vpop.f32.mrf.mxu0
  %v107 = vadd.f32 %v56, %v106
  %108 = vmatmul.f32.gmra.mxu0 %v69
  %v109 = vpop.f32.mrf.mxu0
  %v110 = vadd.f32 %v56, %v109
  %111 = vmatmul.f32.gmra.mxu0 %v72
  %v112 = vpop.f32.mrf.mxu0
  %v113 = vadd.f32 %v56, %v112
  %114 = vmatmul.f32.gmra.mxu0 %v75
  %v115 = vpop.f32.mrf.mxu0
  %v116 = vadd.f32 %v56, %v115
  %117 = vmatmul.f32.gmra.mxu0 %v78
  %v118 = vpop.f32.mrf.mxu0
  %v119 = vadd.f32 %v56, %v118
  %120 = vmatmul.f32.gmra.mxu0 %v81
  %v121 = vpop.f32.mrf.mxu0
  %v122 = vadd.f32 %v56, %v121
  %123 = vdwg.mxu0
  %v124 = vld [vmem:[%s1] sm:$0xff]
  %v125 = vld [vmem:[%s2] sm:$0xff]
  %v126 = vld [vmem:[%s5] sm:$0xff]
  %v127 = vld [vmem:[%s5 + $0x8] sm:$0xff]
  %v128 = vld [vmem:[%s5 + $0x10] sm:$0xff]
  %v129 = vld [vmem:[%s5 + $0x18] sm:$0xff]
  %vm130 = vcmask 261120
  %v132 = vsel %vm130, %v124, 0
  %134 = vmatpush.msra.mxu0 0.0
  %135 = vmatpush.msra.mxu0 0.0
  %136 = vmatpush.msra.mxu0 0.0
  %137 = vmatpush.msra.mxu0 0.0
  %138 = vmatpush.msra.mxu0 0.0
  %139 = vmatpush.msra.mxu0 0.0
  %140 = vmatpush.msra.mxu0 0.0
  %141 = vmatpush.msra.mxu0 0.0
  %142 = vmatpush.msra.mxu0 0.0
  %143 = vmatpush.msra.mxu0 0.0
  %144 = vmatpush.msra.mxu0 0.0
  %145 = vmatpush.msra.mxu0 0.0
  %146 = vmatpush.msra.mxu0 %v129
  %147 = vmatpush.msra.mxu0 %v128
  %148 = vmatpush.msra.mxu0 %v127
  %149 = vmatpush.msra.mxu0 %v126
  %150 = vmatmul.f32.gmra.mxu0 %v132
  %v151 = vpop.f32.mrf.mxu0
  %v152 = vadd.f32 0.0, %v151
  %153 = vdwg.mxu0
  %v154 = vadd.f32 %v101, %v152
  %vm155 = vcmp.lt.s32.totalorder %v43, 96
  %v156 = vxor.u32 %v154, 2147483648
  %v157 = vmul.f32 %v156, 1.442695
  %v158 = vpow.pop %v157
  %v159 = vadd.f32 %v158, 1.0
  %v160 = vrcp.pop %v159
  %v161 = vmul.f32 %v159, %v160
  %v162 = vsub.f32 1.0, %v161
  %v163 = vmul.f32 %v160, %v162
  %v164 = vadd.f32 %v160, %v163
  %vm165 = vweird.f32 %v159
  %vm166 = vweird.f32 %v160
  %vm167 = vmor %vm165, %vm166
  %v168 = vsel %vm167, %v160, %v164
  %v169 = vand.u32 2147483647, %v159
  %vm170 = vcmp.eq.f32.partialorder %v169, 8.507059e+37
  %v171 = vand.u32 %v159, 2147483648
  %v172 = vor.u32 1.1754944e-38, %v171
  %v173 = vsel %vm170, %v172, %v168
  %v174 = vmul.f32 1.0, %v173
  %v175 = vtanh.pop %v154
  %v176 = vsel %vm155, %v174, %v175
  %178 = vrot.lane.b32.xlu0 %v125, 32
  %v179 = vpop.permute.xlu0 %178
  %v181 = vmul.f32 %v176, %v179
  %183 = vrot.lane.b32.xlu0 %v176, 32
  %v184 = vpop.permute.xlu0 %183
  %v186 = vmul.f32 %v176, %v184
  %188 = vrot.lane.b32.xlu0 %v186, 32
  %v189 = vpop.permute.xlu0 %188
  %v191 = vadd.f32 %v181, %v189
  %v192 = vtanh.pop %v191
  %194 = vrot.lane.b32.xlu0 %v192, 32
  %v195 = vpop.permute.xlu0 %194
  %v197 = vmul.f32 %v176, %v195
  %199 = vrot.lane.b32.xlu0 %v197, 64
  %v200 = vpop.permute.xlu0 %199
  %v201 = vsel %vm130, %v200, 0
  %203 = vmatpush.msra.mxu0 0.0
  %204 = vmatpush.msra.mxu0 0.0
  %205 = vmatpush.msra.mxu0 0.0
  %206 = vmatpush.msra.mxu0 0.0
  %207 = vmatpush.msra.mxu0 0.0
  %208 = vmatpush.msra.mxu0 0.0
  %209 = vmatpush.msra.mxu0 0.0
  %210 = vmatpush.msra.mxu0 0.0
  %211 = vmatpush.msra.mxu0 0.0
  %212 = vmatpush.msra.mxu0 0.0
  %213 = vmatpush.msra.mxu0 0.0
  %214 = vmatpush.msra.mxu0 0.0
  %215 = vmatpush.msra.mxu0 %v129
  %216 = vmatpush.msra.mxu0 %v128
  %217 = vmatpush.msra.mxu0 %v127
  %218 = vmatpush.msra.mxu0 %v126
  %219 = vmatmul.f32.gmra.mxu0 %v201
  %v220 = vpop.f32.mrf.mxu0
  %v221 = vadd.f32 0.0, %v220
  %222 = vdwg.mxu0
  %v223 = vadd.f32 %v104, %v221
  %v224 = vxor.u32 %v223, 2147483648
  %v225 = vmul.f32 %v224, 1.442695
  %v226 = vpow.pop %v225
  %v227 = vadd.f32 %v226, 1.0
  %v228 = vrcp.pop %v227
  %v229 = vmul.f32 %v227, %v228
  %v230 = vsub.f32 1.0, %v229
  %v231 = vmul.f32 %v228, %v230
  %v232 = vadd.f32 %v228, %v231
  %vm233 = vweird.f32 %v227
  %vm234 = vweird.f32 %v228
  %vm235 = vmor %vm233, %vm234
  %v236 = vsel %vm235, %v228, %v232
  %v237 = vand.u32 2147483647, %v227
  %vm238 = vcmp.eq.f32.partialorder %v237, 8.507059e+37
  %v239 = vand.u32 %v227, 2147483648
  %v240 = vor.u32 1.1754944e-38, %v239
  %v241 = vsel %vm238, %v240, %v236
  %v242 = vmul.f32 1.0, %v241
  %v243 = vtanh.pop %v223
  %v244 = vsel %vm155, %v242, %v243
  %v245 = vmul.f32 %v244, %v191
  %247 = vrot.lane.b32.xlu0 %v244, 32
  %v248 = vpop.permute.xlu0 %247
  %v250 = vmul.f32 %v244, %v248
  %252 = vrot.lane.b32.xlu0 %v250, 32
  %v253 = vpop.permute.xlu0 %252
  %v255 = vadd.f32 %v245, %v253
  %v256 = vtanh.pop %v255
  %258 = vrot.lane.b32.xlu0 %v256, 32
  %v259 = vpop.permute.xlu0 %258
  %v261 = vmul.f32 %v244, %v259
  %263 = vrot.lane.b32.xlu0 %v261, 64
  %v264 = vpop.permute.xlu0 %263
  %v265 = vsel %vm130, %v264, 0
  %267 = vmatpush.msra.mxu0 0.0
  %268 = vmatpush.msra.mxu0 0.0
  %269 = vmatpush.msra.mxu0 0.0
  %270 = vmatpush.msra.mxu0 0.0
  %271 = vmatpush.msra.mxu0 0.0
  %272 = vmatpush.msra.mxu0 0.0
  %273 = vmatpush.msra.mxu0 0.0
  %274 = vmatpush.msra.mxu0 0.0
  %275 = vmatpush.msra.mxu0 0.0
  %276 = vmatpush.msra.mxu0 0.0
  %277 = vmatpush.msra.mxu0 0.0
  %278 = vmatpush.msra.mxu0 0.0
  %279 = vmatpush.msra.mxu0 %v129
  %280 = vmatpush.msra.mxu0 %v128
  %281 = vmatpush.msra.mxu0 %v127
  %282 = vmatpush.msra.mxu0 %v126
  %283 = vmatmul.f32.gmra.mxu0 %v265
  %v284 = vpop.f32.mrf.mxu0
  %v285 = vadd.f32 0.0, %v284
  %286 = vdwg.mxu0
  %v287 = vadd.f32 %v107, %v285
  %v288 = vxor.u32 %v287, 2147483648
  %v289 = vmul.f32 %v288, 1.442695
  %v290 = vpow.pop %v289
  %v291 = vadd.f32 %v290, 1.0
  %v292 = vrcp.pop %v291
  %v293 = vmul.f32 %v291, %v292
  %v294 = vsub.f32 1.0, %v293
  %v295 = vmul.f32 %v292, %v294
  %v296 = vadd.f32 %v292, %v295
  %vm297 = vweird.f32 %v291
  %vm298 = vweird.f32 %v292
  %vm299 = vmor %vm297, %vm298
  %v300 = vsel %vm299, %v292, %v296
  %v301 = vand.u32 2147483647, %v291
  %vm302 = vcmp.eq.f32.partialorder %v301, 8.507059e+37
  %v303 = vand.u32 %v291, 2147483648
  %v304 = vor.u32 1.1754944e-38, %v303
  %v305 = vsel %vm302, %v304, %v300
  %v306 = vmul.f32 1.0, %v305
  %v307 = vtanh.pop %v287
  %v308 = vsel %vm155, %v306, %v307
  %v309 = vmul.f32 %v308, %v255
  %311 = vrot.lane.b32.xlu0 %v308, 32
  %v312 = vpop.permute.xlu0 %311
  %v314 = vmul.f32 %v308, %v312
  %316 = vrot.lane.b32.xlu0 %v314, 32
  %v317 = vpop.permute.xlu0 %316
  %v319 = vadd.f32 %v309, %v317
  %v320 = vtanh.pop %v319
  %322 = vrot.lane.b32.xlu0 %v320, 32
  %v323 = vpop.permute.xlu0 %322
  %v325 = vmul.f32 %v308, %v323
  %327 = vrot.lane.b32.xlu0 %v325, 64
  %v328 = vpop.permute.xlu0 %327
  %v329 = vsel %vm130, %v328, 0
  %331 = vmatpush.msra.mxu0 0.0
  %332 = vmatpush.msra.mxu0 0.0
  %333 = vmatpush.msra.mxu0 0.0
  %334 = vmatpush.msra.mxu0 0.0
  %335 = vmatpush.msra.mxu0 0.0
  %336 = vmatpush.msra.mxu0 0.0
  %337 = vmatpush.msra.mxu0 0.0
  %338 = vmatpush.msra.mxu0 0.0
  %339 = vmatpush.msra.mxu0 0.0
  %340 = vmatpush.msra.mxu0 0.0
  %341 = vmatpush.msra.mxu0 0.0
  %342 = vmatpush.msra.mxu0 0.0
  %343 = vmatpush.msra.mxu0 %v129
  %344 = vmatpush.msra.mxu0 %v128
  %345 = vmatpush.msra.mxu0 %v127
  %346 = vmatpush.msra.mxu0 %v126
  %347 = vmatmul.f32.gmra.mxu0 %v329
  %v348 = vpop.f32.mrf.mxu0
  %v349 = vadd.f32 0.0, %v348
  %350 = vdwg.mxu0
  %v351 = vadd.f32 %v110, %v349
  %v352 = vxor.u32 %v351, 2147483648
  %v353 = vmul.f32 %v352, 1.442695
  %v354 = vpow.pop %v353
  %v355 = vadd.f32 %v354, 1.0
  %v356 = vrcp.pop %v355
  %v357 = vmul.f32 %v355, %v356
  %v358 = vsub.f32 1.0, %v357
  %v359 = vmul.f32 %v356, %v358
  %v360 = vadd.f32 %v356, %v359
  %vm361 = vweird.f32 %v355
  %vm362 = vweird.f32 %v356
  %vm363 = vmor %vm361, %vm362
  %v364 = vsel %vm363, %v356, %v360
  %v365 = vand.u32 2147483647, %v355
  %vm366 = vcmp.eq.f32.partialorder %v365, 8.507059e+37
  %v367 = vand.u32 %v355, 2147483648
  %v368 = vor.u32 1.1754944e-38, %v367
  %v369 = vsel %vm366, %v368, %v364
  %v370 = vmul.f32 1.0, %v369
  %v371 = vtanh.pop %v351
  %v372 = vsel %vm155, %v370, %v371
  %v373 = vmul.f32 %v372, %v319
  %375 = vrot.lane.b32.xlu0 %v372, 32
  %v376 = vpop.permute.xlu0 %375
  %v378 = vmul.f32 %v372, %v376
  %380 = vrot.lane.b32.xlu0 %v378, 32
  %v381 = vpop.permute.xlu0 %380
  %v383 = vadd.f32 %v373, %v381
  %v384 = vtanh.pop %v383
  %386 = vrot.lane.b32.xlu0 %v384, 32
  %v387 = vpop.permute.xlu0 %386
  %v389 = vmul.f32 %v372, %v387
  %391 = vrot.lane.b32.xlu0 %v389, 64
  %v392 = vpop.permute.xlu0 %391
  %v393 = vsel %vm130, %v392, 0
  %395 = vmatpush.msra.mxu0 0.0
  %396 = vmatpush.msra.mxu0 0.0
  %397 = vmatpush.msra.mxu0 0.0
  %398 = vmatpush.msra.mxu0 0.0
  %399 = vmatpush.msra.mxu0 0.0
  %400 = vmatpush.msra.mxu0 0.0
  %401 = vmatpush.msra.mxu0 0.0
  %402 = vmatpush.msra.mxu0 0.0
  %403 = vmatpush.msra.mxu0 0.0
  %404 = vmatpush.msra.mxu0 0.0
  %405 = vmatpush.msra.mxu0 0.0
  %406 = vmatpush.msra.mxu0 0.0
  %407 = vmatpush.msra.mxu0 %v129
  %408 = vmatpush.msra.mxu0 %v128
  %409 = vmatpush.msra.mxu0 %v127
  %410 = vmatpush.msra.mxu0 %v126
  %411 = vmatmul.f32.gmra.mxu0 %v393
  %v412 = vpop.f32.mrf.mxu0
  %v413 = vadd.f32 0.0, %v412
  %414 = vdwg.mxu0
  %v415 = vadd.f32 %v113, %v413
  %v416 = vxor.u32 %v415, 2147483648
  %v417 = vmul.f32 %v416, 1.442695
  %v418 = vpow.pop %v417
  %v419 = vadd.f32 %v418, 1.0
  %v420 = vrcp.pop %v419
  %v421 = vmul.f32 %v419, %v420
  %v422 = vsub.f32 1.0, %v421
  %v423 = vmul.f32 %v420, %v422
  %v424 = vadd.f32 %v420, %v423
  %vm425 = vweird.f32 %v419
  %vm426 = vweird.f32 %v420
  %vm427 = vmor %vm425, %vm426
  %v428 = vsel %vm427, %v420, %v424
  %v429 = vand.u32 2147483647, %v419
  %vm430 = vcmp.eq.f32.partialorder %v429, 8.507059e+37
  %v431 = vand.u32 %v419, 2147483648
  %v432 = vor.u32 1.1754944e-38, %v431
  %v433 = vsel %vm430, %v432, %v428
  %v434 = vmul.f32 1.0, %v433
  %v435 = vtanh.pop %v415
  %v436 = vsel %vm155, %v434, %v435
  %v437 = vmul.f32 %v436, %v383
  %439 = vrot.lane.b32.xlu0 %v436, 32
  %v440 = vpop.permute.xlu0 %439
  %v442 = vmul.f32 %v436, %v440
  %444 = vrot.lane.b32.xlu0 %v442, 32
  %v445 = vpop.permute.xlu0 %444
  %v447 = vadd.f32 %v437, %v445
  %v448 = vtanh.pop %v447
  %450 = vrot.lane.b32.xlu0 %v448, 32
  %v451 = vpop.permute.xlu0 %450
  %v453 = vmul.f32 %v436, %v451
  %455 = vrot.lane.b32.xlu0 %v453, 64
  %v456 = vpop.permute.xlu0 %455
  %v457 = vsel %vm130, %v456, 0
  %459 = vmatpush.msra.mxu0 0.0
  %460 = vmatpush.msra.mxu0 0.0
  %461 = vmatpush.msra.mxu0 0.0
  %462 = vmatpush.msra.mxu0 0.0
  %463 = vmatpush.msra.mxu0 0.0
  %464 = vmatpush.msra.mxu0 0.0
  %465 = vmatpush.msra.mxu0 0.0
  %466 = vmatpush.msra.mxu0 0.0
  %467 = vmatpush.msra.mxu0 0.0
  %468 = vmatpush.msra.mxu0 0.0
  %469 = vmatpush.msra.mxu0 0.0
  %470 = vmatpush.msra.mxu0 0.0
  %471 = vmatpush.msra.mxu0 %v129
  %472 = vmatpush.msra.mxu0 %v128
  %473 = vmatpush.msra.mxu0 %v127
  %474 = vmatpush.msra.mxu0 %v126
  %475 = vmatmul.f32.gmra.mxu0 %v457
  %v476 = vpop.f32.mrf.mxu0
  %v477 = vadd.f32 0.0, %v476
  %478 = vdwg.mxu0
  %v479 = vadd.f32 %v116, %v477
  %v480 = vxor.u32 %v479, 2147483648
  %v481 = vmul.f32 %v480, 1.442695
  %v482 = vpow.pop %v481
  %v483 = vadd.f32 %v482, 1.0
  %v484 = vrcp.pop %v483
  %v485 = vmul.f32 %v483, %v484
  %v486 = vsub.f32 1.0, %v485
  %v487 = vmul.f32 %v484, %v486
  %v488 = vadd.f32 %v484, %v487
  %vm489 = vweird.f32 %v483
  %vm490 = vweird.f32 %v484
  %vm491 = vmor %vm489, %vm490
  %v492 = vsel %vm491, %v484, %v488
  %v493 = vand.u32 2147483647, %v483
  %vm494 = vcmp.eq.f32.partialorder %v493, 8.507059e+37
  %v495 = vand.u32 %v483, 2147483648
  %v496 = vor.u32 1.1754944e-38, %v495
  %v497 = vsel %vm494, %v496, %v492
  %v498 = vmul.f32 1.0, %v497
  %v499 = vtanh.pop %v479
  %v500 = vsel %vm155, %v498, %v499
  %v501 = vmul.f32 %v500, %v447
  %503 = vrot.lane.b32.xlu0 %v500, 32
  %v504 = vpop.permute.xlu0 %503
  %v506 = vmul.f32 %v500, %v504
  %508 = vrot.lane.b32.xlu0 %v506, 32
  %v509 = vpop.permute.xlu0 %508
  %v511 = vadd.f32 %v501, %v509
  %v512 = vtanh.pop %v511
  %514 = vrot.lane.b32.xlu0 %v512, 32
  %v515 = vpop.permute.xlu0 %514
  %v517 = vmul.f32 %v500, %v515
  %519 = vrot.lane.b32.xlu0 %v517, 64
  %v520 = vpop.permute.xlu0 %519
  %v521 = vsel %vm130, %v520, 0
  %523 = vmatpush.msra.mxu0 0.0
  %524 = vmatpush.msra.mxu0 0.0
  %525 = vmatpush.msra.mxu0 0.0
  %526 = vmatpush.msra.mxu0 0.0
  %527 = vmatpush.msra.mxu0 0.0
  %528 = vmatpush.msra.mxu0 0.0
  %529 = vmatpush.msra.mxu0 0.0
  %530 = vmatpush.msra.mxu0 0.0
  %531 = vmatpush.msra.mxu0 0.0
  %532 = vmatpush.msra.mxu0 0.0
  %533 = vmatpush.msra.mxu0 0.0
  %534 = vmatpush.msra.mxu0 0.0
  %535 = vmatpush.msra.mxu0 %v129
  %536 = vmatpush.msra.mxu0 %v128
  %537 = vmatpush.msra.mxu0 %v127
  %538 = vmatpush.msra.mxu0 %v126
  %539 = vmatmul.f32.gmra.mxu0 %v521
  %v540 = vpop.f32.mrf.mxu0
  %v541 = vadd.f32 0.0, %v540
  %542 = vdwg.mxu0
  %v543 = vadd.f32 %v119, %v541
  %v544 = vxor.u32 %v543, 2147483648
  %v545 = vmul.f32 %v544, 1.442695
  %v546 = vpow.pop %v545
  %v547 = vadd.f32 %v546, 1.0
  %v548 = vrcp.pop %v547
  %v549 = vmul.f32 %v547, %v548
  %v550 = vsub.f32 1.0, %v549
  %v551 = vmul.f32 %v548, %v550
  %v552 = vadd.f32 %v548, %v551
  %vm553 = vweird.f32 %v547
  %vm554 = vweird.f32 %v548
  %vm555 = vmor %vm553, %vm554
  %v556 = vsel %vm555, %v548, %v552
  %v557 = vand.u32 2147483647, %v547
  %vm558 = vcmp.eq.f32.partialorder %v557, 8.507059e+37
  %v559 = vand.u32 %v547, 2147483648
  %v560 = vor.u32 1.1754944e-38, %v559
  %v561 = vsel %vm558, %v560, %v556
  %v562 = vmul.f32 1.0, %v561
  %v563 = vtanh.pop %v543
  %v564 = vsel %vm155, %v562, %v563
  %v565 = vmul.f32 %v564, %v511
  %567 = vrot.lane.b32.xlu0 %v564, 32
  %v568 = vpop.permute.xlu0 %567
  %v570 = vmul.f32 %v564, %v568
  %572 = vrot.lane.b32.xlu0 %v570, 32
  %v573 = vpop.permute.xlu0 %572
  %v575 = vadd.f32 %v565, %v573
  %v576 = vtanh.pop %v575
  %578 = vrot.lane.b32.xlu0 %v576, 32
  %v579 = vpop.permute.xlu0 %578
  %v581 = vmul.f32 %v564, %v579
  %583 = vrot.lane.b32.xlu0 %v581, 64
  %v584 = vpop.permute.xlu0 %583
  %v585 = vsel %vm130, %v584, 0
  %587 = vmatpush.msra.mxu0 0.0
  %588 = vmatpush.msra.mxu0 0.0
  %589 = vmatpush.msra.mxu0 0.0
  %590 = vmatpush.msra.mxu0 0.0
  %591 = vmatpush.msra.mxu0 0.0
  %592 = vmatpush.msra.mxu0 0.0
  %593 = vmatpush.msra.mxu0 0.0
  %594 = vmatpush.msra.mxu0 0.0
  %595 = vmatpush.msra.mxu0 0.0
  %596 = vmatpush.msra.mxu0 0.0
  %597 = vmatpush.msra.mxu0 0.0
  %598 = vmatpush.msra.mxu0 0.0
  %599 = vmatpush.msra.mxu0 %v129
  %600 = vmatpush.msra.mxu0 %v128
  %601 = vmatpush.msra.mxu0 %v127
  %602 = vmatpush.msra.mxu0 %v126
  %603 = vmatmul.f32.gmra.mxu0 %v585
  %v604 = vpop.f32.mrf.mxu0
  %v605 = vadd.f32 0.0, %v604
  %606 = vdwg.mxu0
  %v607 = vadd.f32 %v122, %v605
  %v608 = vxor.u32 %v607, 2147483648
  %v609 = vmul.f32 %v608, 1.442695
  %v610 = vpow.pop %v609
  %v611 = vadd.f32 %v610, 1.0
  %v612 = vrcp.pop %v611
  %v613 = vmul.f32 %v611, %v612
  %v614 = vsub.f32 1.0, %v613
  %v615 = vmul.f32 %v612, %v614
  %v616 = vadd.f32 %v612, %v615
  %vm617 = vweird.f32 %v611
  %vm618 = vweird.f32 %v612
  %vm619 = vmor %vm617, %vm618
  %v620 = vsel %vm619, %v612, %v616
  %v621 = vand.u32 2147483647, %v611
  %vm622 = vcmp.eq.f32.partialorder %v621, 8.507059e+37
  %v623 = vand.u32 %v611, 2147483648
  %v624 = vor.u32 1.1754944e-38, %v623
  %v625 = vsel %vm622, %v624, %v620
  %v626 = vmul.f32 1.0, %v625
  %v627 = vtanh.pop %v607
  %v628 = vsel %vm155, %v626, %v627
  %v629 = vmul.f32 %v628, %v575
  %631 = vrot.lane.b32.xlu0 %v628, 32
  %v632 = vpop.permute.xlu0 %631
  %v634 = vmul.f32 %v628, %v632
  %636 = vrot.lane.b32.xlu0 %v634, 32
  %v637 = vpop.permute.xlu0 %636
  %v639 = vadd.f32 %v629, %v637
  %v640 = vtanh.pop %v639
  %642 = vrot.lane.b32.xlu0 %v640, 32
  %v643 = vpop.permute.xlu0 %642
  %v645 = vmul.f32 %v628, %v643
  %648 = vrot.lane.b32.xlu0 %v645, 96
  %v649 = vpop.permute.xlu0 %648
  %v651 = vsel %vm130, %v200, %v649
  %653 = vrot.lane.b32.xlu0 %v581, 96
  %v654 = vpop.permute.xlu0 %653
  %v656 = vsel %vm130, %v264, %v654
  %658 = vrot.lane.b32.xlu0 %v517, 96
  %v659 = vpop.permute.xlu0 %658
  %v661 = vsel %vm130, %v328, %v659
  %663 = vrot.lane.b32.xlu0 %v453, 96
  %v664 = vpop.permute.xlu0 %663
  %v666 = vsel %vm130, %v392, %v664
  %668 = vrot.lane.b32.xlu0 %v389, 96
  %v669 = vpop.permute.xlu0 %668
  %v671 = vsel %vm130, %v456, %v669
  %673 = vrot.lane.b32.xlu0 %v325, 96
  %v674 = vpop.permute.xlu0 %673
  %v676 = vsel %vm130, %v520, %v674
  %678 = vrot.lane.b32.xlu0 %v261, 96
  %v679 = vpop.permute.xlu0 %678
  %v681 = vsel %vm130, %v584, %v679
  %682 = vrot.lane.b32.xlu0 %v645, 64
  %v683 = vpop.permute.xlu0 %682
  %685 = vrot.lane.b32.xlu0 %v197, 96
  %v686 = vpop.permute.xlu0 %685
  %v688 = vsel %vm130, %v683, %v686
  %v689 = vld [vmem:[%s4] sm:$0xff]
  %v690 = vld [vmem:[%s4 + $0x8] sm:$0xff]
  %v691 = vld [vmem:[%s4 + $0x10] sm:$0xff]
  %v692 = vld [vmem:[%s4 + $0x18] sm:$0xff]
  %v693 = vld [vmem:[%s4 + $0x20] sm:$0xff]
  %v694 = vld [vmem:[%s4 + $0x28] sm:$0xff]
  %v695 = vld [vmem:[%s4 + $0x30] sm:$0xff]
  %v696 = vld [vmem:[%s4 + $0x38] sm:$0xff]
  %v697 = vld [vmem:[%s8] sm:$0x1]
  %v699 = vperm.slane %v697, 0
  %vm701 = vcmask 523264
  %v703 = vsel %vm701, %v651, 0
  %v706 = vsel %vm701, %v656, 0
  %v709 = vsel %vm701, %v661, 0
  %v712 = vsel %vm701, %v666, 0
  %v715 = vsel %vm701, %v671, 0
  %v718 = vsel %vm701, %v676, 0
  %v721 = vsel %vm701, %v681, 0
  %v724 = vsel %vm701, %v688, 0
  %726 = vmatpush.msra.mxu0 0.0
  %727 = vmatpush.msra.mxu0 0.0
  %728 = vmatpush.msra.mxu0 0.0
  %729 = vmatpush.msra.mxu0 0.0
  %730 = vmatpush.msra.mxu0 0.0
  %731 = vmatpush.msra.mxu0 0.0
  %732 = vmatpush.msra.mxu0 0.0
  %733 = vmatpush.msra.mxu0 0.0
  %734 = vmatpush.msra.mxu0 %v696
  %735 = vmatpush.msra.mxu0 %v695
  %736 = vmatpush.msra.mxu0 %v694
  %737 = vmatpush.msra.mxu0 %v693
  %738 = vmatpush.msra.mxu0 %v692
  %739 = vmatpush.msra.mxu0 %v691
  %740 = vmatpush.msra.mxu0 %v690
  %741 = vmatpush.msra.mxu0 %v689
  %742 = vmatmul.f32.gmra.mxu0 %v703
  %v743 = vpop.f32.mrf.mxu0
  %v744 = vadd.f32 %v699, %v743
  %745 = vmatmul.f32.gmra.mxu0 %v706
  %v746 = vpop.f32.mrf.mxu0
  %v747 = vadd.f32 %v699, %v746
  %748 = vmatmul.f32.gmra.mxu0 %v709
  %v749 = vpop.f32.mrf.mxu0
  %v750 = vadd.f32 %v699, %v749
  %751 = vmatmul.f32.gmra.mxu0 %v712
  %v752 = vpop.f32.mrf.mxu0
  %v753 = vadd.f32 %v699, %v752
  %754 = vmatmul.f32.gmra.mxu0 %v715
  %v755 = vpop.f32.mrf.mxu0
  %v756 = vadd.f32 %v699, %v755
  %757 = vmatmul.f32.gmra.mxu0 %v718
  %v758 = vpop.f32.mrf.mxu0
  %v759 = vadd.f32 %v699, %v758
  %760 = vmatmul.f32.gmra.mxu0 %v721
  %v761 = vpop.f32.mrf.mxu0
  %v762 = vadd.f32 %v699, %v761
  %763 = vmatmul.f32.gmra.mxu0 %v724
  %v764 = vpop.f32.mrf.mxu0
  %v765 = vadd.f32 %v699, %v764
  %766 = vdwg.mxu0
  %s767 = scalar_lea.vmem %s1, 8
  %v768 = vld [vmem:[%s767] sm:$0xff]
  %s769 = scalar_lea.vmem %s2, 8
  %v770 = vld [vmem:[%s769] sm:$0xff]
  %v771 = vld [vmem:[%s6] sm:$0xff]
  %v772 = vld [vmem:[%s6 + $0x8] sm:$0xff]
  %v773 = vld [vmem:[%s6 + $0x10] sm:$0xff]
  %v774 = vld [vmem:[%s6 + $0x18] sm:$0xff]
  %v776 = vsel %vm130, %v768, 0
  %778 = vmatpush.msra.mxu0 0.0
  %779 = vmatpush.msra.mxu0 0.0
  %780 = vmatpush.msra.mxu0 0.0
  %781 = vmatpush.msra.mxu0 0.0
  %782 = vmatpush.msra.mxu0 0.0
  %783 = vmatpush.msra.mxu0 0.0
  %784 = vmatpush.msra.mxu0 0.0
  %785 = vmatpush.msra.mxu0 0.0
  %786 = vmatpush.msra.mxu0 0.0
  %787 = vmatpush.msra.mxu0 0.0
  %788 = vmatpush.msra.mxu0 0.0
  %789 = vmatpush.msra.mxu0 0.0
  %790 = vmatpush.msra.mxu0 %v774
  %791 = vmatpush.msra.mxu0 %v773
  %792 = vmatpush.msra.mxu0 %v772
  %793 = vmatpush.msra.mxu0 %v771
  %794 = vmatmul.f32.gmra.mxu0 %v776
  %v795 = vpop.f32.mrf.mxu0
  %v796 = vadd.f32 0.0, %v795
  %797 = vdwg.mxu0
  %v798 = vadd.f32 %v744, %v796
  %v799 = vxor.u32 %v798, 2147483648
  %v800 = vmul.f32 %v799, 1.442695
  %v801 = vpow.pop %v800
  %v802 = vadd.f32 %v801, 1.0
  %v803 = vrcp.pop %v802
  %v804 = vmul.f32 %v802, %v803
  %v805 = vsub.f32 1.0, %v804
  %v806 = vmul.f32 %v803, %v805
  %v807 = vadd.f32 %v803, %v806
  %vm808 = vweird.f32 %v802
  %vm809 = vweird.f32 %v803
  %vm810 = vmor %vm808, %vm809
  %v811 = vsel %vm810, %v803, %v807
  %v812 = vand.u32 2147483647, %v802
  %vm813 = vcmp.eq.f32.partialorder %v812, 8.507059e+37
  %v814 = vand.u32 %v802, 2147483648
  %v815 = vor.u32 1.1754944e-38, %v814
  %v816 = vsel %vm813, %v815, %v811
  %v817 = vmul.f32 1.0, %v816
  %v818 = vtanh.pop %v798
  %v819 = vsel %vm155, %v817, %v818
  %821 = vrot.lane.b32.xlu0 %v770, 32
  %v822 = vpop.permute.xlu0 %821
  %v824 = vmul.f32 %v819, %v822
  %826 = vrot.lane.b32.xlu0 %v819, 32
  %v827 = vpop.permute.xlu0 %826
  %v829 = vmul.f32 %v819, %v827
  %831 = vrot.lane.b32.xlu0 %v829, 32
  %v832 = vpop.permute.xlu0 %831
  %v834 = vadd.f32 %v824, %v832
  %v835 = vtanh.pop %v834
  %837 = vrot.lane.b32.xlu0 %v835, 32
  %v838 = vpop.permute.xlu0 %837
  %v840 = vmul.f32 %v819, %v838
  %842 = vrot.lane.b32.xlu0 %v840, 64
  %v843 = vpop.permute.xlu0 %842
  %v844 = vsel %vm130, %v843, 0
  %846 = vmatpush.msra.mxu0 0.0
  %847 = vmatpush.msra.mxu0 0.0
  %848 = vmatpush.msra.mxu0 0.0
  %849 = vmatpush.msra.mxu0 0.0
  %850 = vmatpush.msra.mxu0 0.0
  %851 = vmatpush.msra.mxu0 0.0
  %852 = vmatpush.msra.mxu0 0.0
  %853 = vmatpush.msra.mxu0 0.0
  %854 = vmatpush.msra.mxu0 0.0
  %855 = vmatpush.msra.mxu0 0.0
  %856 = vmatpush.msra.mxu0 0.0
  %857 = vmatpush.msra.mxu0 0.0
  %858 = vmatpush.msra.mxu0 %v774
  %859 = vmatpush.msra.mxu0 %v773
  %860 = vmatpush.msra.mxu0 %v772
  %861 = vmatpush.msra.mxu0 %v771
  %862 = vmatmul.f32.gmra.mxu0 %v844
  %v863 = vpop.f32.mrf.mxu0
  %v864 = vadd.f32 0.0, %v863
  %865 = vdwg.mxu0
  %v866 = vadd.f32 %v747, %v864
  %v867 = vxor.u32 %v866, 2147483648
  %v868 = vmul.f32 %v867, 1.442695
  %v869 = vpow.pop %v868
  %v870 = vadd.f32 %v869, 1.0
  %v871 = vrcp.pop %v870
  %v872 = vmul.f32 %v870, %v871
  %v873 = vsub.f32 1.0, %v872
  %v874 = vmul.f32 %v871, %v873
  %v875 = vadd.f32 %v871, %v874
  %vm876 = vweird.f32 %v870
  %vm877 = vweird.f32 %v871
  %vm878 = vmor %vm876, %vm877
  %v879 = vsel %vm878, %v871, %v875
  %v880 = vand.u32 2147483647, %v870
  %vm881 = vcmp.eq.f32.partialorder %v880, 8.507059e+37
  %v882 = vand.u32 %v870, 2147483648
  %v883 = vor.u32 1.1754944e-38, %v882
  %v884 = vsel %vm881, %v883, %v879
  %v885 = vmul.f32 1.0, %v884
  %v886 = vtanh.pop %v866
  %v887 = vsel %vm155, %v885, %v886
  %v888 = vmul.f32 %v887, %v834
  %890 = vrot.lane.b32.xlu0 %v887, 32
  %v891 = vpop.permute.xlu0 %890
  %v893 = vmul.f32 %v887, %v891
  %895 = vrot.lane.b32.xlu0 %v893, 32
  %v896 = vpop.permute.xlu0 %895
  %v898 = vadd.f32 %v888, %v896
  %v899 = vtanh.pop %v898
  %901 = vrot.lane.b32.xlu0 %v899, 32
  %v902 = vpop.permute.xlu0 %901
  %v904 = vmul.f32 %v887, %v902
  %906 = vrot.lane.b32.xlu0 %v904, 64
  %v907 = vpop.permute.xlu0 %906
  %v908 = vsel %vm130, %v907, 0
  %910 = vmatpush.msra.mxu0 0.0
  %911 = vmatpush.msra.mxu0 0.0
  %912 = vmatpush.msra.mxu0 0.0
  %913 = vmatpush.msra.mxu0 0.0
  %914 = vmatpush.msra.mxu0 0.0
  %915 = vmatpush.msra.mxu0 0.0
  %916 = vmatpush.msra.mxu0 0.0
  %917 = vmatpush.msra.mxu0 0.0
  %918 = vmatpush.msra.mxu0 0.0
  %919 = vmatpush.msra.mxu0 0.0
  %920 = vmatpush.msra.mxu0 0.0
  %921 = vmatpush.msra.mxu0 0.0
  %922 = vmatpush.msra.mxu0 %v774
  %923 = vmatpush.msra.mxu0 %v773
  %924 = vmatpush.msra.mxu0 %v772
  %925 = vmatpush.msra.mxu0 %v771
  %926 = vmatmul.f32.gmra.mxu0 %v908
  %v927 = vpop.f32.mrf.mxu0
  %v928 = vadd.f32 0.0, %v927
  %929 = vdwg.mxu0
  %v930 = vadd.f32 %v750, %v928
  %v931 = vxor.u32 %v930, 2147483648
  %v932 = vmul.f32 %v931, 1.442695
  %v933 = vpow.pop %v932
  %v934 = vadd.f32 %v933, 1.0
  %v935 = vrcp.pop %v934
  %v936 = vmul.f32 %v934, %v935
  %v937 = vsub.f32 1.0, %v936
  %v938 = vmul.f32 %v935, %v937
  %v939 = vadd.f32 %v935, %v938
  %vm940 = vweird.f32 %v934
  %vm941 = vweird.f32 %v935
  %vm942 = vmor %vm940, %vm941
  %v943 = vsel %vm942, %v935, %v939
  %v944 = vand.u32 2147483647, %v934
  %vm945 = vcmp.eq.f32.partialorder %v944, 8.507059e+37
  %v946 = vand.u32 %v934, 2147483648
  %v947 = vor.u32 1.1754944e-38, %v946
  %v948 = vsel %vm945, %v947, %v943
  %v949 = vmul.f32 1.0, %v948
  %v950 = vtanh.pop %v930
  %v951 = vsel %vm155, %v949, %v950
  %v952 = vmul.f32 %v951, %v898
  %954 = vrot.lane.b32.xlu0 %v951, 32
  %v955 = vpop.permute.xlu0 %954
  %v957 = vmul.f32 %v951, %v955
  %959 = vrot.lane.b32.xlu0 %v957, 32
  %v960 = vpop.permute.xlu0 %959
  %v962 = vadd.f32 %v952, %v960
  %v963 = vtanh.pop %v962
  %965 = vrot.lane.b32.xlu0 %v963, 32
  %v966 = vpop.permute.xlu0 %965
  %v968 = vmul.f32 %v951, %v966
  %970 = vrot.lane.b32.xlu0 %v968, 64
  %v971 = vpop.permute.xlu0 %970
  %v972 = vsel %vm130, %v971, 0
  %974 = vmatpush.msra.mxu0 0.0
  %975 = vmatpush.msra.mxu0 0.0
  %976 = vmatpush.msra.mxu0 0.0
  %977 = vmatpush.msra.mxu0 0.0
  %978 = vmatpush.msra.mxu0 0.0
  %979 = vmatpush.msra.mxu0 0.0
  %980 = vmatpush.msra.mxu0 0.0
  %981 = vmatpush.msra.mxu0 0.0
  %982 = vmatpush.msra.mxu0 0.0
  %983 = vmatpush.msra.mxu0 0.0
  %984 = vmatpush.msra.mxu0 0.0
  %985 = vmatpush.msra.mxu0 0.0
  %986 = vmatpush.msra.mxu0 %v774
  %987 = vmatpush.msra.mxu0 %v773
  %988 = vmatpush.msra.mxu0 %v772
  %989 = vmatpush.msra.mxu0 %v771
  %990 = vmatmul.f32.gmra.mxu0 %v972
  %v991 = vpop.f32.mrf.mxu0
  %v992 = vadd.f32 0.0, %v991
  %993 = vdwg.mxu0
  %v994 = vadd.f32 %v753, %v992
  %v995 = vxor.u32 %v994, 2147483648
  %v996 = vmul.f32 %v995, 1.442695
  %v997 = vpow.pop %v996
  %v998 = vadd.f32 %v997, 1.0
  %v999 = vrcp.pop %v998
  %v1000 = vmul.f32 %v998, %v999
  %v1001 = vsub.f32 1.0, %v1000
  %v1002 = vmul.f32 %v999, %v1001
  %v1003 = vadd.f32 %v999, %v1002
  %vm1004 = vweird.f32 %v998
  %vm1005 = vweird.f32 %v999
  %vm1006 = vmor %vm1004, %vm1005
  %v1007 = vsel %vm1006, %v999, %v1003
  %v1008 = vand.u32 2147483647, %v998
  %vm1009 = vcmp.eq.f32.partialorder %v1008, 8.507059e+37
  %v1010 = vand.u32 %v998, 2147483648
  %v1011 = vor.u32 1.1754944e-38, %v1010
  %v1012 = vsel %vm1009, %v1011, %v1007
  %v1013 = vmul.f32 1.0, %v1012
  %v1014 = vtanh.pop %v994
  %v1015 = vsel %vm155, %v1013, %v1014
  %v1016 = vmul.f32 %v1015, %v962
  %1018 = vrot.lane.b32.xlu0 %v1015, 32
  %v1019 = vpop.permute.xlu0 %1018
  %v1021 = vmul.f32 %v1015, %v1019
  %1023 = vrot.lane.b32.xlu0 %v1021, 32
  %v1024 = vpop.permute.xlu0 %1023
  %v1026 = vadd.f32 %v1016, %v1024
  %v1027 = vtanh.pop %v1026
  %1029 = vrot.lane.b32.xlu0 %v1027, 32
  %v1030 = vpop.permute.xlu0 %1029
  %v1032 = vmul.f32 %v1015, %v1030
  %1034 = vrot.lane.b32.xlu0 %v1032, 64
  %v1035 = vpop.permute.xlu0 %1034
  %v1036 = vsel %vm130, %v1035, 0
  %1038 = vmatpush.msra.mxu0 0.0
  %1039 = vmatpush.msra.mxu0 0.0
  %1040 = vmatpush.msra.mxu0 0.0
  %1041 = vmatpush.msra.mxu0 0.0
  %1042 = vmatpush.msra.mxu0 0.0
  %1043 = vmatpush.msra.mxu0 0.0
  %1044 = vmatpush.msra.mxu0 0.0
  %1045 = vmatpush.msra.mxu0 0.0
  %1046 = vmatpush.msra.mxu0 0.0
  %1047 = vmatpush.msra.mxu0 0.0
  %1048 = vmatpush.msra.mxu0 0.0
  %1049 = vmatpush.msra.mxu0 0.0
  %1050 = vmatpush.msra.mxu0 %v774
  %1051 = vmatpush.msra.mxu0 %v773
  %1052 = vmatpush.msra.mxu0 %v772
  %1053 = vmatpush.msra.mxu0 %v771
  %1054 = vmatmul.f32.gmra.mxu0 %v1036
  %v1055 = vpop.f32.mrf.mxu0
  %v1056 = vadd.f32 0.0, %v1055
  %1057 = vdwg.mxu0
  %v1058 = vadd.f32 %v756, %v1056
  %v1059 = vxor.u32 %v1058, 2147483648
  %v1060 = vmul.f32 %v1059, 1.442695
  %v1061 = vpow.pop %v1060
  %v1062 = vadd.f32 %v1061, 1.0
  %v1063 = vrcp.pop %v1062
  %v1064 = vmul.f32 %v1062, %v1063
  %v1065 = vsub.f32 1.0, %v1064
  %v1066 = vmul.f32 %v1063, %v1065
  %v1067 = vadd.f32 %v1063, %v1066
  %vm1068 = vweird.f32 %v1062
  %vm1069 = vweird.f32 %v1063
  %vm1070 = vmor %vm1068, %vm1069
  %v1071 = vsel %vm1070, %v1063, %v1067
  %v1072 = vand.u32 2147483647, %v1062
  %vm1073 = vcmp.eq.f32.partialorder %v1072, 8.507059e+37
  %v1074 = vand.u32 %v1062, 2147483648
  %v1075 = vor.u32 1.1754944e-38, %v1074
  %v1076 = vsel %vm1073, %v1075, %v1071
  %v1077 = vmul.f32 1.0, %v1076
  %v1078 = vtanh.pop %v1058
  %v1079 = vsel %vm155, %v1077, %v1078
  %v1080 = vmul.f32 %v1079, %v1026
  %1082 = vrot.lane.b32.xlu0 %v1079, 32
  %v1083 = vpop.permute.xlu0 %1082
  %v1085 = vmul.f32 %v1079, %v1083
  %1087 = vrot.lane.b32.xlu0 %v1085, 32
  %v1088 = vpop.permute.xlu0 %1087
  %v1090 = vadd.f32 %v1080, %v1088
  %v1091 = vtanh.pop %v1090
  %1093 = vrot.lane.b32.xlu0 %v1091, 32
  %v1094 = vpop.permute.xlu0 %1093
  %v1096 = vmul.f32 %v1079, %v1094
  %1098 = vrot.lane.b32.xlu0 %v1096, 64
  %v1099 = vpop.permute.xlu0 %1098
  %v1100 = vsel %vm130, %v1099, 0
  %1102 = vmatpush.msra.mxu0 0.0
  %1103 = vmatpush.msra.mxu0 0.0
  %1104 = vmatpush.msra.mxu0 0.0
  %1105 = vmatpush.msra.mxu0 0.0
  %1106 = vmatpush.msra.mxu0 0.0
  %1107 = vmatpush.msra.mxu0 0.0
  %1108 = vmatpush.msra.mxu0 0.0
  %1109 = vmatpush.msra.mxu0 0.0
  %1110 = vmatpush.msra.mxu0 0.0
  %1111 = vmatpush.msra.mxu0 0.0
  %1112 = vmatpush.msra.mxu0 0.0
  %1113 = vmatpush.msra.mxu0 0.0
  %1114 = vmatpush.msra.mxu0 %v774
  %1115 = vmatpush.msra.mxu0 %v773
  %1116 = vmatpush.msra.mxu0 %v772
  %1117 = vmatpush.msra.mxu0 %v771
  %1118 = vmatmul.f32.gmra.mxu0 %v1100
  %v1119 = vpop.f32.mrf.mxu0
  %v1120 = vadd.f32 0.0, %v1119
  %1121 = vdwg.mxu0
  %v1122 = vadd.f32 %v759, %v1120
  %v1123 = vxor.u32 %v1122, 2147483648
  %v1124 = vmul.f32 %v1123, 1.442695
  %v1125 = vpow.pop %v1124
  %v1126 = vadd.f32 %v1125, 1.0
  %v1127 = vrcp.pop %v1126
  %v1128 = vmul.f32 %v1126, %v1127
  %v1129 = vsub.f32 1.0, %v1128
  %v1130 = vmul.f32 %v1127, %v1129
  %v1131 = vadd.f32 %v1127, %v1130
  %vm1132 = vweird.f32 %v1126
  %vm1133 = vweird.f32 %v1127
  %vm1134 = vmor %vm1132, %vm1133
  %v1135 = vsel %vm1134, %v1127, %v1131
  %v1136 = vand.u32 2147483647, %v1126
  %vm1137 = vcmp.eq.f32.partialorder %v1136, 8.507059e+37
  %v1138 = vand.u32 %v1126, 2147483648
  %v1139 = vor.u32 1.1754944e-38, %v1138
  %v1140 = vsel %vm1137, %v1139, %v1135
  %v1141 = vmul.f32 1.0, %v1140
  %v1142 = vtanh.pop %v1122
  %v1143 = vsel %vm155, %v1141, %v1142
  %v1144 = vmul.f32 %v1143, %v1090
  %1146 = vrot.lane.b32.xlu0 %v1143, 32
  %v1147 = vpop.permute.xlu0 %1146
  %v1149 = vmul.f32 %v1143, %v1147
  %1151 = vrot.lane.b32.xlu0 %v1149, 32
  %v1152 = vpop.permute.xlu0 %1151
  %v1154 = vadd.f32 %v1144, %v1152
  %v1155 = vtanh.pop %v1154
  %1157 = vrot.lane.b32.xlu0 %v1155, 32
  %v1158 = vpop.permute.xlu0 %1157
  %v1160 = vmul.f32 %v1143, %v1158
  %1162 = vrot.lane.b32.xlu0 %v1160, 64
  %v1163 = vpop.permute.xlu0 %1162
  %v1164 = vsel %vm130, %v1163, 0
  %1166 = vmatpush.msra.mxu0 0.0
  %1167 = vmatpush.msra.mxu0 0.0
  %1168 = vmatpush.msra.mxu0 0.0
  %1169 = vmatpush.msra.mxu0 0.0
  %1170 = vmatpush.msra.mxu0 0.0
  %1171 = vmatpush.msra.mxu0 0.0
  %1172 = vmatpush.msra.mxu0 0.0
  %1173 = vmatpush.msra.mxu0 0.0
  %1174 = vmatpush.msra.mxu0 0.0
  %1175 = vmatpush.msra.mxu0 0.0
  %1176 = vmatpush.msra.mxu0 0.0
  %1177 = vmatpush.msra.mxu0 0.0
  %1178 = vmatpush.msra.mxu0 %v774
  %1179 = vmatpush.msra.mxu0 %v773
  %1180 = vmatpush.msra.mxu0 %v772
  %1181 = vmatpush.msra.mxu0 %v771
  %1182 = vmatmul.f32.gmra.mxu0 %v1164
  %v1183 = vpop.f32.mrf.mxu0
  %v1184 = vadd.f32 0.0, %v1183
  %1185 = vdwg.mxu0
  %v1186 = vadd.f32 %v762, %v1184
  %v1187 = vxor.u32 %v1186, 2147483648
  %v1188 = vmul.f32 %v1187, 1.442695
  %v1189 = vpow.pop %v1188
  %v1190 = vadd.f32 %v1189, 1.0
  %v1191 = vrcp.pop %v1190
  %v1192 = vmul.f32 %v1190, %v1191
  %v1193 = vsub.f32 1.0, %v1192
  %v1194 = vmul.f32 %v1191, %v1193
  %v1195 = vadd.f32 %v1191, %v1194
  %vm1196 = vweird.f32 %v1190
  %vm1197 = vweird.f32 %v1191
  %vm1198 = vmor %vm1196, %vm1197
  %v1199 = vsel %vm1198, %v1191, %v1195
  %v1200 = vand.u32 2147483647, %v1190
  %vm1201 = vcmp.eq.f32.partialorder %v1200, 8.507059e+37
  %v1202 = vand.u32 %v1190, 2147483648
  %v1203 = vor.u32 1.1754944e-38, %v1202
  %v1204 = vsel %vm1201, %v1203, %v1199
  %v1205 = vmul.f32 1.0, %v1204
  %v1206 = vtanh.pop %v1186
  %v1207 = vsel %vm155, %v1205, %v1206
  %v1208 = vmul.f32 %v1207, %v1154
  %1210 = vrot.lane.b32.xlu0 %v1207, 32
  %v1211 = vpop.permute.xlu0 %1210
  %v1213 = vmul.f32 %v1207, %v1211
  %1215 = vrot.lane.b32.xlu0 %v1213, 32
  %v1216 = vpop.permute.xlu0 %1215
  %v1218 = vadd.f32 %v1208, %v1216
  %v1219 = vtanh.pop %v1218
  %1221 = vrot.lane.b32.xlu0 %v1219, 32
  %v1222 = vpop.permute.xlu0 %1221
  %v1224 = vmul.f32 %v1207, %v1222
  %1226 = vrot.lane.b32.xlu0 %v1224, 64
  %v1227 = vpop.permute.xlu0 %1226
  %v1228 = vsel %vm130, %v1227, 0
  %1230 = vmatpush.msra.mxu0 0.0
  %1231 = vmatpush.msra.mxu0 0.0
  %1232 = vmatpush.msra.mxu0 0.0
  %1233 = vmatpush.msra.mxu0 0.0
  %1234 = vmatpush.msra.mxu0 0.0
  %1235 = vmatpush.msra.mxu0 0.0
  %1236 = vmatpush.msra.mxu0 0.0
  %1237 = vmatpush.msra.mxu0 0.0
  %1238 = vmatpush.msra.mxu0 0.0
  %1239 = vmatpush.msra.mxu0 0.0
  %1240 = vmatpush.msra.mxu0 0.0
  %1241 = vmatpush.msra.mxu0 0.0
  %1242 = vmatpush.msra.mxu0 %v774
  %1243 = vmatpush.msra.mxu0 %v773
  %1244 = vmatpush.msra.mxu0 %v772
  %1245 = vmatpush.msra.mxu0 %v771
  %1246 = vmatmul.f32.gmra.mxu0 %v1228
  %v1247 = vpop.f32.mrf.mxu0
  %v1248 = vadd.f32 0.0, %v1247
  %1249 = vdwg.mxu0
  %v1250 = vadd.f32 %v765, %v1248
  %v1251 = vxor.u32 %v1250, 2147483648
  %v1252 = vmul.f32 %v1251, 1.442695
  %v1253 = vpow.pop %v1252
  %v1254 = vadd.f32 %v1253, 1.0
  %v1255 = vrcp.pop %v1254
  %v1256 = vmul.f32 %v1254, %v1255
  %v1257 = vsub.f32 1.0, %v1256
  %v1258 = vmul.f32 %v1255, %v1257
  %v1259 = vadd.f32 %v1255, %v1258
  %vm1260 = vweird.f32 %v1254
  %vm1261 = vweird.f32 %v1255
  %vm1262 = vmor %vm1260, %vm1261
  %v1263 = vsel %vm1262, %v1255, %v1259
  %v1264 = vand.u32 2147483647, %v1254
  %vm1265 = vcmp.eq.f32.partialorder %v1264, 8.507059e+37
  %v1266 = vand.u32 %v1254, 2147483648
  %v1267 = vor.u32 1.1754944e-38, %v1266
  %v1268 = vsel %vm1265, %v1267, %v1263
  %v1269 = vmul.f32 1.0, %v1268
  %v1270 = vtanh.pop %v1250
  %v1271 = vsel %vm155, %v1269, %v1270
  %v1272 = vmul.f32 %v1271, %v1218
  %1274 = vrot.lane.b32.xlu0 %v1271, 32
  %v1275 = vpop.permute.xlu0 %1274
  %v1277 = vmul.f32 %v1271, %v1275
  %1279 = vrot.lane.b32.xlu0 %v1277, 32
  %v1280 = vpop.permute.xlu0 %1279
  %v1282 = vadd.f32 %v1272, %v1280
  %v1283 = vtanh.pop %v1282
  %1285 = vrot.lane.b32.xlu0 %v1283, 32
  %v1286 = vpop.permute.xlu0 %1285
  %v1288 = vmul.f32 %v1271, %v1286
  %vm1289 = vcmp.lt.s32.totalorder %v43, 16
  %1291 = vrot.lane.b32.xlu0 %v1288, 64
  %v1292 = vpop.permute.xlu0 %1291
  %v1295 = vsel %vm1289, %v1292, %v843
  %v1296 = vld [vmem:[%s9] sm:$0x1]
  %v1298 = vperm.slane %v1296, 0
  %v1300 = vmul.f32 %v1295, %v1298
  %v1301 = vsel %vm130, %v1300, 0.0
  %1302 = vadd.xlane.f32.xlu0 %v1301
  %v1303 = vpop.xlane.xlu0 %1302
  %v1304 = vld [vmem:[#allocation2] sm:$0x1]
  %v1306 = vperm.slane %v1304, 0
  %v1308 = vadd.f32 %v1303, %v1306
  %vm1309 = vcmask 7168
  %1310 = vst.msk [vmem:[%s11] sm:$0xff] %vm1309, %v1308
  %1311 = vrot.lane.b32.xlu0 %v1288, 96
  %v1312 = vpop.permute.xlu0 %1311
  %1315 = vrot.lane.b32.xlu0 %v639, 32
  %v1316 = vpop.permute.xlu0 %1315
  %1319 = vrot.lane.b32.xlu0 %v1282, 64
  %v1320 = vpop.permute.xlu0 %1319
  %v1322 = vsel %vm130, %v683, %v1312
  %v1323 = vsel %vm701, %v1322, %v1316
  %vm1324 = vcmask 785408
  %v1325 = vsel %vm1324, %v1323, %v1320
  %1326 = vst [vmem:[%s12] sm:$0xff] %v1325
  // Predicated region
  $region46: #{bilstm_forward.1} parent=0 // pred_check
    _
  $region47: #{bilstm_forward.1} parent=0 // pred_check_branch
    %1328 = sbr.rel (0) target = $region49
  $region48: #{bilstm_forward.1} parent=0 // pred_region
    _
  $region49: #{bilstm_forward.1} parent=0 // pred_fallthru
    _
  // Predicated region
  $region50: #{bilstm_forward.1} parent=0 // pred_check
    _
  $region51: #{bilstm_forward.1} parent=0 // pred_check_branch
    %1330 = sbr.rel (0) target = $region53
  $region52: #{bilstm_forward.1} parent=0 // pred_region
    _
  $region53: #{bilstm_forward.1} parent=0 // pred_fallthru
    _
  // Predicated region
  $region54: #{bilstm_forward.1} parent=0 // pred_check
    _
  $region55: #{bilstm_forward.1} parent=0 // pred_check_branch
    %1332 = sbr.rel (0) target = $region57
  $region56: #{bilstm_forward.1} parent=0 // pred_region
    _
  $region57: #{bilstm_forward.1} parent=0 // pred_fallthru
    _
  // Predicated region
  $region58: #{bilstm_forward.1} parent=0 // pred_check
    _
  $region59: #{bilstm_forward.1} parent=0 // pred_check_branch
    %1334 = sbr.rel (0) target = $region61
  $region60: #{bilstm_forward.1} parent=0 // pred_region
    _
  $region61: #{bilstm_forward.1} parent=0 // pred_fallthru
    _

</llo_original>
